<compile_context>
chip_gen: v5e
topology: v5e:2x2
jax: 0.10.0
libtpu: 0.0.40
codegen_flags: <defaults>
</compile_context>

<pallas_src>
import functools

import jax
import jax.numpy as jnp
from jax.experimental import pallas as pl
from jax.experimental.pallas import tpu as pltpu


_LAYER_DIMS = [(784, 512), (512, 256), (256, 64), (64, 10)]
_H3_PAD = 128   # layer-3 output padded 64 -> 128 (lane-dense L3 activation / L4 K)


def _round_up(x, m):
    return ((x + m - 1) // m) * m


def _mlp_kernel(x_ref,
                w1_ref, b1_ref,
                w2_ref, b2_ref,
                w3_ref, b3_ref,
                w4_ref, b4_ref,
                o_ref):
    """Fused 4-layer MLP forward for one batch tile.

    x arrives in f32 straight from HBM and is cast to bf16 on the VPU just
    before the first dot; all dots hit the MXU with bf16 operands and f32
    accumulation; bias add + ReLU stay in f32 (v5e has no bf16 VPU path).
    """
    x = x_ref[...].astype(jnp.bfloat16)

    h = jnp.dot(x, w1_ref[...], preferred_element_type=jnp.float32)
    h = jnp.maximum(h + b1_ref[...], 0.0)

    h = jnp.dot(h.astype(jnp.bfloat16), w2_ref[...],
                preferred_element_type=jnp.float32)
    h = jnp.maximum(h + b2_ref[...], 0.0)

    h = jnp.dot(h.astype(jnp.bfloat16), w3_ref[...],
                preferred_element_type=jnp.float32)
    h = jnp.maximum(h + b3_ref[...], 0.0)      # lanes 64..127 are exact zeros

    h = jnp.dot(h.astype(jnp.bfloat16), w4_ref[...],
                preferred_element_type=jnp.float32)
    o_ref[...] = (h + b4_ref[...]).astype(o_ref.dtype)


def pack_params(params):
    """One-time parameter packing (hoisted out of the per-call path).

    * weights cast to bf16 (MXU-rate operands, half the DMA bytes),
    * layer-3 output padded 64 -> 128 (w3 -> (256,128), b3 -> (1,128),
      w4 -> (128,10)); the pad columns/rows are exact zeros through ReLU so the
      numerics are unchanged,
    * biases kept in f32 for the VPU bias-add/ReLU.
    """
    w3 = jnp.zeros((256, _H3_PAD), jnp.bfloat16)
    w3 = w3.at[:, :64].set(params["w3"].astype(jnp.bfloat16))
    w4 = jnp.zeros((_H3_PAD, 10), jnp.bfloat16)
    w4 = w4.at[:64, :].set(params["w4"].astype(jnp.bfloat16))
    b3 = jnp.zeros((1, _H3_PAD), jnp.float32)
    b3 = b3.at[:, :64].set(params["b3"].reshape(1, -1).astype(jnp.float32))
    return {
        "w1": params["w1"].astype(jnp.bfloat16),                 # (784, 512)
        "b1": params["b1"].reshape(1, -1).astype(jnp.float32),
        "w2": params["w2"].astype(jnp.bfloat16),                 # (512, 256)
        "b2": params["b2"].reshape(1, -1).astype(jnp.float32),
        "w3": w3,                                                # (256, 128)
        "b3": b3,                                                # (1, 128)
        "w4": w4,                                                # (128, 10)
        "b4": params["b4"].reshape(1, -1).astype(jnp.float32),   # (1, 10)
    }


def _choose_tile(B, batch_tile):
    """Load-balanced, 16-aligned batch tile.

    * at most ~batch_tile rows per tile (VMEM sizing),
    * at least two grid steps once B >= 512 so the "parallel" batch axis can
      shard across v7x's two TensorCores while each tile stays >= 256 rows
      (keeps the f32-x DMA hidden under MXU work on v5e),
    * a single full-array block for small batches (no alignment/padding needed).
    """
    n_blocks = pl.cdiv(B, batch_tile)
    if n_blocks == 1 and B >= 512:
        n_blocks = 2
    if n_blocks == 1:
        return B
    return _round_up(pl.cdiv(B, n_blocks), 16)


@functools.partial(jax.jit, static_argnames=("batch_tile",))
def net_forward(x, packed, *, batch_tile=512):
    """Fused MLP forward via a single pallas_call.

    x:      (B, 784) float32 (flattened MNIST layout)
    packed: output of pack_params() — weights as (in, out) bf16 (layer-3/4
            lane-padded), biases as (1, out) f32.  Numerically identical to
            torch's x @ W.T + b up to the bf16 matmul-operand cast.
    Returns (B, 10) float32 logits.
    """
    B, D_in = x.shape
    assert D_in == 784

    tile = _choose_tile(B, batch_tile)
    n_blocks = pl.cdiv(B, tile)
    B_pad = n_blocks * tile

    # Only the batch dim is (cheaply) zero-padded, and only when the balanced
    # tile does not divide B.  x is otherwise fed straight to the kernel; the
    # f32 -> bf16 cast happens inside the kernel, not as a separate XLA pass.
    x_in = x if B_pad == B else jnp.pad(x, ((0, B_pad - B), (0, 0)))

    w1, b1 = packed["w1"], packed["b1"]
    w2, b2 = packed["w2"], packed["b2"]
    w3, b3 = packed["w3"], packed["b3"]
    w4, b4 = packed["w4"], packed["b4"]

    def full_block(arr):
        # Whole-array block, constant across the grid (stays resident in VMEM).
        nd = arr.ndim
        return pl.BlockSpec(arr.shape, lambda i, _nd=nd: (0,) * _nd)

    weight_bytes = sum(int(a.size) * a.dtype.itemsize
                       for a in (w1, b1, w2, b2, w3, b3, w4, b4))
    flops = 2 * B_pad * (784 * 512 + 512 * 256 + 256 * _H3_PAD + _H3_PAD * 10)
    bytes_accessed = int(B_pad) * 784 * 4 + weight_bytes + int(B_pad) * 10 * 4

    # Rough per-call VMEM footprint: double-buffered x tile + output tile,
    # resident (double-buffered) weights, f32 intermediates.  Only override the
    # scoped-VMEM default when a large batch_tile actually needs it.
    vmem_need = (2 * tile * (784 + 10) * 4
                 + 2 * weight_bytes
                 + tile * (512 + 256 + _H3_PAD) * 4)
    vmem_limit = None
    if vmem_need > 14 * 1024 * 1024:
        vmem_limit = min(_round_up(vmem_need + vmem_need // 4, 1 << 20),
                         56 * 1024 * 1024)

    out = pl.pallas_call(
        _mlp_kernel,
        out_shape=jax.ShapeDtypeStruct((B_pad, 10), jnp.float32),
        grid_spec=pltpu.PrefetchScalarGridSpec(
            num_scalar_prefetch=0,
            grid=(n_blocks,),
            in_specs=[
                # 784 equals the full array dim, so the (8,128) rule is
                # satisfied without K padding; Mosaic masks the partial lanes.
                pl.BlockSpec((tile, D_in), lambda i: (i, 0)),
                full_block(w1), full_block(b1),
                full_block(w2), full_block(b2),
                full_block(w3), full_block(b3),
                full_block(w4), full_block(b4),
            ],
            # Direct 10-wide output (full array dim): masked partial stores on
            # a tiny output beat a 128-wide f32 slab + wrapper slice re-read.
            out_specs=pl.BlockSpec((tile, 10), lambda i: (i, 0)),
        ),
        compiler_params=pltpu.CompilerParams(
            dimension_semantics=("parallel",),
            vmem_limit_bytes=vmem_limit,
        ),
        cost_estimate=pl.CostEstimate(
            flops=int(flops), transcendentals=0,
            bytes_accessed=int(bytes_accessed)),
    )(x_in, w1, b1, w2, b2, w3, b3, w4, b4)

    return out if B_pad == B else out[:B]


def init_params(key):
    """Deterministic init matching torch.nn.Linear's U(-1/sqrt(in), 1/sqrt(in)).

    Weights stored as (in_features, out_features); biases as (1, out).
    """
    params = {}
    for idx, (d_in, d_out) in enumerate(_LAYER_DIMS, start=1):
        key, kw, kb = jax.random.split(key, 3)
        bound = 1.0 / (d_in ** 0.5)
        params[f"w{idx}"] = jax.random.uniform(
            kw, (d_in, d_out), jnp.float32, minval=-bound, maxval=bound)
        params[f"b{idx}"] = jax.random.uniform(
            kb, (1, d_out), jnp.float32, minval=-bound, maxval=bound)
    return params


def _reference_forward_f32(x, params):
    """Pure-f32 JAX reference (PyTorch semantics)."""
    h = x
    for idx in range(1, 4):
        h = jnp.maximum(h @ params[f"w{idx}"] + params[f"b{idx}"], 0.0)
    return h @ params["w4"] + params["b4"]


def _reference_forward_bf16(x, params):
    """Reference with the same precision recipe as the kernel:
    bf16 matmul operands, f32 accumulation, f32 bias/ReLU."""
    h = x.astype(jnp.bfloat16)
    for idx in range(1, 5):
        w = params[f"w{idx}"].astype(jnp.bfloat16)
        b = params[f"b{idx}"].astype(jnp.float32)
        h = jnp.dot(h, w, preferred_element_type=jnp.float32) + b
        if idx < 4:
            h = jnp.maximum(h, 0.0).astype(jnp.bfloat16)
    return h


if __name__ == "__main__":
    key = jax.random.PRNGKey(0)
    kp, kx1, kx2, kx3 = jax.random.split(key, 4)

    params = init_params(kp)
    packed = pack_params(params)            # one-time packing (hoisted)

    # Small, deterministic test batch (flattened-MNIST feature dim is fixed).
    x = jax.random.normal(kx1, (32, 784), dtype=jnp.float32)
    out = jax.block_until_ready(net_forward(x, packed))
    assert out.shape == (32, 10)
    assert jnp.allclose(out, _reference_forward_bf16(x, params),
                        atol=2e-3, rtol=2e-3), "mismatch vs bf16 reference"
    assert jnp.allclose(out, _reference_forward_f32(x, params),
                        atol=5e-2, rtol=5e-2), "mismatch vs f32 reference"

    # Tiny batch: single full-array block (no sublane alignment / padding).
    x_small = jax.random.normal(kx2, (5, 784), dtype=jnp.float32)
    out_small = jax.block_until_ready(net_forward(x_small, packed))
    assert out_small.shape == (5, 10)
    assert jnp.allclose(out_small, _reference_forward_bf16(x_small, params),
                        atol=2e-3, rtol=2e-3), "mismatch (tiny batch)"

    # Multi-block grid with a non-divisible batch: exercises the balanced
    # 16-aligned tile + batch-only padding path (batch_tile shrunk just to
    # force several grid steps at this small test size).
    x_odd = jax.random.normal(kx3, (37, 784), dtype=jnp.float32)
    out_odd = jax.block_until_ready(net_forward(x_odd, packed, batch_tile=16))
    assert out_odd.shape == (37, 10)
    assert jnp.allclose(out_odd, _reference_forward_bf16(x_odd, params),
                        atol=2e-3, rtol=2e-3), "mismatch (multi-block batch)"

    # TODO(synk): Dropout / LogSoftmax / CrossEntropyLoss / Adam are defined in
    # Net.__init__ but never used in forward(), so they are not implemented.
    print("KERNEL_OK")
</pallas_src>

<mosaic_0001>
module attributes {stable_mosaic.version = 11 : i64} {
  func.func @_mlp_kernel(%arg0: i32, %arg1: memref<32x784xf32, #tpu.memory_space<vmem>>, %arg2: memref<784x512xbf16, #tpu.memory_space<vmem>>, %arg3: memref<1x512xf32, #tpu.memory_space<vmem>>, %arg4: memref<512x256xbf16, #tpu.memory_space<vmem>>, %arg5: memref<1x256xf32, #tpu.memory_space<vmem>>, %arg6: memref<256x128xbf16, #tpu.memory_space<vmem>>, %arg7: memref<1x128xf32, #tpu.memory_space<vmem>>, %arg8: memref<128x10xbf16, #tpu.memory_space<vmem>>, %arg9: memref<1x10xf32, #tpu.memory_space<vmem>>, %arg10: memref<32x10xf32, #tpu.memory_space<vmem>>) attributes {dimension_semantics = [#tpu.dimension_semantics<parallel>], iteration_bounds = array<i64: 1>, scalar_prefetch = 0 : i64, scratch_operands = 0 : i64, tpu.core_type = #tpu.core_type<tc>, window_params = [{transform_indices = @transform_0, window_bounds = array<i64: 32, 784>}, {pipeline_mode = #tpu.pipeline_mode<synchronous>, transform_indices = @transform_1, window_bounds = array<i64: 784, 512>}, {pipeline_mode = #tpu.pipeline_mode<synchronous>, transform_indices = @transform_2, window_bounds = array<i64: 1, 512>}, {pipeline_mode = #tpu.pipeline_mode<synchronous>, transform_indices = @transform_3, window_bounds = array<i64: 512, 256>}, {pipeline_mode = #tpu.pipeline_mode<synchronous>, transform_indices = @transform_4, window_bounds = array<i64: 1, 256>}, {pipeline_mode = #tpu.pipeline_mode<synchronous>, transform_indices = @transform_5, window_bounds = array<i64: 256, 128>}, {pipeline_mode = #tpu.pipeline_mode<synchronous>, transform_indices = @transform_6, window_bounds = array<i64: 1, 128>}, {pipeline_mode = #tpu.pipeline_mode<synchronous>, transform_indices = @transform_7, window_bounds = array<i64: 128, 10>}, {pipeline_mode = #tpu.pipeline_mode<synchronous>, transform_indices = @transform_8, window_bounds = array<i64: 1, 10>}, {transform_indices = @transform_9, window_bounds = array<i64: 32, 10>}]} {
    %c0 = arith.constant 0 : index
    %c0_0 = arith.constant 0 : index
    %0 = vector.load %arg1[%c0, %c0_0] : memref<32x784xf32, #tpu.memory_space<vmem>>, vector<32x784xf32>
    %1 = arith.truncf %0 : vector<32x784xf32> to vector<32x784xbf16>
    %c0_1 = arith.constant 0 : index
    %c0_2 = arith.constant 0 : index
    %2 = vector.load %arg2[%c0_1, %c0_2] : memref<784x512xbf16, #tpu.memory_space<vmem>>, vector<784x512xbf16>
    %cst = arith.constant dense<0.000000e+00> : vector<32x512xf32>
    %3 = tpu.matmul %1, %2, %cst {dimension_numbers = #tpu.dot_dimension_numbers<[1], [0], [0], [1], [0, 0, 1, 1], [], []>} : vector<32x784xbf16>, vector<784x512xbf16>, vector<32x512xf32> -> vector<32x512xf32>
    %c0_3 = arith.constant 0 : index
    %c0_4 = arith.constant 0 : index
    %4 = vector.load %arg3[%c0_3, %c0_4] : memref<1x512xf32, #tpu.memory_space<vmem>>, vector<1x512xf32>
    %5 = vector.broadcast %4 : vector<1x512xf32> to vector<32x512xf32>
    %6 = arith.addf %3, %5 : vector<32x512xf32>
    %cst_5 = arith.constant 0.000000e+00 : f32
    %7 = vector.broadcast %cst_5 : f32 to vector<32x512xf32>
    %8 = arith.maximumf %6, %7 : vector<32x512xf32>
    %9 = arith.truncf %8 : vector<32x512xf32> to vector<32x512xbf16>
    %c0_6 = arith.constant 0 : index
    %c0_7 = arith.constant 0 : index
    %10 = vector.load %arg4[%c0_6, %c0_7] : memref<512x256xbf16, #tpu.memory_space<vmem>>, vector<512x256xbf16>
    %cst_8 = arith.constant dense<0.000000e+00> : vector<32x256xf32>
    %11 = tpu.matmul %9, %10, %cst_8 {dimension_numbers = #tpu.dot_dimension_numbers<[1], [0], [0], [1], [0, 0, 1, 1], [], []>} : vector<32x512xbf16>, vector<512x256xbf16>, vector<32x256xf32> -> vector<32x256xf32>
    %c0_9 = arith.constant 0 : index
    %c0_10 = arith.constant 0 : index
    %12 = vector.load %arg5[%c0_9, %c0_10] : memref<1x256xf32, #tpu.memory_space<vmem>>, vector<1x256xf32>
    %13 = vector.broadcast %12 : vector<1x256xf32> to vector<32x256xf32>
    %14 = arith.addf %11, %13 : vector<32x256xf32>
    %cst_11 = arith.constant 0.000000e+00 : f32
    %15 = vector.broadcast %cst_11 : f32 to vector<32x256xf32>
    %16 = arith.maximumf %14, %15 : vector<32x256xf32>
    %17 = arith.truncf %16 : vector<32x256xf32> to vector<32x256xbf16>
    %c0_12 = arith.constant 0 : index
    %c0_13 = arith.constant 0 : index
    %18 = vector.load %arg6[%c0_12, %c0_13] : memref<256x128xbf16, #tpu.memory_space<vmem>>, vector<256x128xbf16>
    %cst_14 = arith.constant dense<0.000000e+00> : vector<32x128xf32>
    %19 = tpu.matmul %17, %18, %cst_14 {dimension_numbers = #tpu.dot_dimension_numbers<[1], [0], [0], [1], [0, 0, 1, 1], [], []>} : vector<32x256xbf16>, vector<256x128xbf16>, vector<32x128xf32> -> vector<32x128xf32>
    %c0_15 = arith.constant 0 : index
    %c0_16 = arith.constant 0 : index
    %20 = vector.load %arg7[%c0_15, %c0_16] : memref<1x128xf32, #tpu.memory_space<vmem>>, vector<1x128xf32>
    %21 = vector.broadcast %20 : vector<1x128xf32> to vector<32x128xf32>
    %22 = arith.addf %19, %21 : vector<32x128xf32>
    %cst_17 = arith.constant 0.000000e+00 : f32
    %23 = vector.broadcast %cst_17 : f32 to vector<32x128xf32>
    %24 = arith.maximumf %22, %23 : vector<32x128xf32>
    %25 = arith.truncf %24 : vector<32x128xf32> to vector<32x128xbf16>
    %c0_18 = arith.constant 0 : index
    %c0_19 = arith.constant 0 : index
    %26 = vector.load %arg8[%c0_18, %c0_19] : memref<128x10xbf16, #tpu.memory_space<vmem>>, vector<128x10xbf16>
    %cst_20 = arith.constant dense<0.000000e+00> : vector<32x10xf32>
    %27 = tpu.matmul %25, %26, %cst_20 {dimension_numbers = #tpu.dot_dimension_numbers<[1], [0], [0], [1], [0, 0, 1, 1], [], []>} : vector<32x128xbf16>, vector<128x10xbf16>, vector<32x10xf32> -> vector<32x10xf32>
    %c0_21 = arith.constant 0 : index
    %c0_22 = arith.constant 0 : index
    %28 = vector.load %arg9[%c0_21, %c0_22] : memref<1x10xf32, #tpu.memory_space<vmem>>, vector<1x10xf32>
    %29 = vector.broadcast %28 : vector<1x10xf32> to vector<32x10xf32>
    %30 = arith.addf %27, %29 : vector<32x10xf32>
    %c0_23 = arith.constant 0 : index
    %c0_24 = arith.constant 0 : index
    %31 = vector.load %arg10[%c0_23, %c0_24] : memref<32x10xf32, #tpu.memory_space<vmem>>, vector<32x10xf32>
    tpu.vector_store %arg10[%c0_23, %c0_24], %30 {strides = array<i32>} : memref<32x10xf32, #tpu.memory_space<vmem>>, vector<32x10xf32>,
    return
  }
  func.func @transform_0(%arg0: i32) -> (i32, i32) {
    %c0_i32 = arith.constant 0 : i32
    %c0_i32_0 = arith.constant 0 : i32
    return %arg0, %c0_i32 : i32, i32
  }
  func.func @transform_1(%arg0: i32) -> (i32, i32) {
    %c0_i32 = arith.constant 0 : i32
    %c0_i32_0 = arith.constant 0 : i32
    %c0_i32_1 = arith.constant 0 : i32
    return %c0_i32, %c0_i32_0 : i32, i32
  }
  func.func @transform_2(%arg0: i32) -> (i32, i32) {
    %c0_i32 = arith.constant 0 : i32
    %c0_i32_0 = arith.constant 0 : i32
    %c0_i32_1 = arith.constant 0 : i32
    return %c0_i32, %c0_i32_0 : i32, i32
  }
  func.func @transform_3(%arg0: i32) -> (i32, i32) {
    %c0_i32 = arith.constant 0 : i32
    %c0_i32_0 = arith.constant 0 : i32
    %c0_i32_1 = arith.constant 0 : i32
    return %c0_i32, %c0_i32_0 : i32, i32
  }
  func.func @transform_4(%arg0: i32) -> (i32, i32) {
    %c0_i32 = arith.constant 0 : i32
    %c0_i32_0 = arith.constant 0 : i32
    %c0_i32_1 = arith.constant 0 : i32
    return %c0_i32, %c0_i32_0 : i32, i32
  }
  func.func @transform_5(%arg0: i32) -> (i32, i32) {
    %c0_i32 = arith.constant 0 : i32
    %c0_i32_0 = arith.constant 0 : i32
    %c0_i32_1 = arith.constant 0 : i32
    return %c0_i32, %c0_i32_0 : i32, i32
  }
  func.func @transform_6(%arg0: i32) -> (i32, i32) {
    %c0_i32 = arith.constant 0 : i32
    %c0_i32_0 = arith.constant 0 : i32
    %c0_i32_1 = arith.constant 0 : i32
    return %c0_i32, %c0_i32_0 : i32, i32
  }
  func.func @transform_7(%arg0: i32) -> (i32, i32) {
    %c0_i32 = arith.constant 0 : i32
    %c0_i32_0 = arith.constant 0 : i32
    %c0_i32_1 = arith.constant 0 : i32
    return %c0_i32, %c0_i32_0 : i32, i32
  }
  func.func @transform_8(%arg0: i32) -> (i32, i32) {
    %c0_i32 = arith.constant 0 : i32
    %c0_i32_0 = arith.constant 0 : i32
    %c0_i32_1 = arith.constant 0 : i32
    return %c0_i32, %c0_i32_0 : i32, i32
  }
  func.func @transform_9(%arg0: i32) -> (i32, i32) {
    %c0_i32 = arith.constant 0 : i32
    %c0_i32_0 = arith.constant 0 : i32
    return %arg0, %c0_i32 : i32, i32
  }
}

</mosaic_0001>

<llo_original>
// kernel: net_forward.1
$region0: #{net_forward.1}
  #allocation0 [shape = 'u32[]', space=smem, size = 0x4, offset = 0x4, fixed_abs, tag = 'smem constant byte address 0x4 - core index']
  #allocation1 [shape = 'u32[72,128]{1,0:T(1,128)}', space=vmem, size = 0x9000, scoped, tag = 'internal scratch']
  %s0 = inlined_call_operand.hbm [shape: f32[32,784], index: 0, kind: input, shape index: {}]
  %s1 = inlined_call_operand.hbm [shape: bf16[784,512], index: 1, kind: input, shape index: {}]
  %s2 = inlined_call_operand.vmem [shape: f32[1,512], index: 2, kind: input, shape index: {}]
  %s3 = inlined_call_operand.hbm [shape: bf16[512,256], index: 3, kind: input, shape index: {}]
  %s4 = inlined_call_operand.vmem [shape: f32[1,256], index: 4, kind: input, shape index: {}]
  %s5 = inlined_call_operand.hbm [shape: bf16[256,128], index: 5, kind: input, shape index: {}]
  %s6 = inlined_call_operand.vmem [shape: f32[1,128], index: 6, kind: input, shape index: {}]
  %s7 = inlined_call_operand.vmem [shape: bf16[128,10], index: 7, kind: input, shape index: {}]
  %s8 = inlined_call_operand.vmem [shape: f32[1,10], index: 8, kind: input, shape index: {}]
  %s9 = inlined_call_operand.vmem [shape: f32[32,10], index: 9, kind: output, shape index: {}]
  %s10 = sld [smem:[#allocation0]]
  $region62: #{net_forward.1} parent=0
    _
  %s12 = ssub.s32 1, %s10
  %s13 = scalar_select 0, %s12, %s10
  $region1: #{net_forward.1} parent=0
    #allocation2 [shape = 'u8[114688]{0}', space=vmem, size = 0x1c000, scoped, tag = 'input window, operand 0, single buffered']
    #allocation3 [shape = 's32[1]{0}', space=sflag, size = 0x4, scoped, tag = 'scoped memory for net_forward.1']
    #allocation4 [shape = 'u8[802816]{0}', space=vmem, size = 0xc4000, scoped, tag = 'input window, operand 1, single buffered']
    #allocation5 [shape = 's32[1]{0}', space=sflag, size = 0x4, scoped, tag = 'scoped memory for net_forward.1']
    #allocation6 [shape = 'u8[262144]{0}', space=vmem, size = 0x40000, scoped, tag = 'input window, operand 3, single buffered']
    #allocation7 [shape = 'u8[65536]{0}', space=vmem, size = 0x10000, scoped, tag = 'input window, operand 5, single buffered']
    #allocation8 [shape = 's32[1]{0}', space=sflag, size = 0x4, scoped, tag = 'scoped memory for net_forward.1']
    %14 = vsyncpa [#allocation3], 0
    %15 = vsyncpa [#allocation5], 0
    %16 = vsyncpa [#allocation8], 0
    // Predicated region
    $region2: #{net_forward.1} parent=1 // pred_check
      _
    $region3: #{net_forward.1} parent=1 // pred_check_branch
      %18 = sbr.rel (0) target = $region5
    $region4: #{net_forward.1} parent=1 // pred_region
      %20 = vsyncadd [#allocation3], 0
      %s21 = sshll.u32 %s0, 4
      %s22 = int_to_ptr.hbm [resolvable:$true] %s21
      %s23 = sshll.u32 [#allocation2], 4
      %s24 = int_to_ptr.vmem [resolvable:$true] %s23
      %29 = dma.hbm_to_vmem [thread:$0]  %s22, 3584, %s24, [#allocation3], 896, 896, 56
    $region5: #{net_forward.1} parent=1 // pred_fallthru
      _
    // Predicated region
    $region6: #{net_forward.1} parent=1 // pred_check
      _
    $region7: #{net_forward.1} parent=1 // pred_check_branch
      %31 = sbr.rel (0) target = $region9
    $region8: #{net_forward.1} parent=1 // pred_region
      %33 = vsyncadd [#allocation5], 0
      %s34 = sshll.u32 %s1, 4
      %s35 = int_to_ptr.hbm [resolvable:$true] %s34
      %s36 = sshll.u32 [#allocation4], 4
      %s37 = int_to_ptr.vmem [resolvable:$true] %s36
      %42 = dma.hbm_to_vmem [thread:$0]  %s35, 25088, %s37, [#allocation5], 256, 256, 16
    $region9: #{net_forward.1} parent=1 // pred_fallthru
      _
    // Predicated region
    $region10: #{net_forward.1} parent=1 // pred_check
      _
    $region11: #{net_forward.1} parent=1 // pred_check_branch
      %44 = sbr.rel (0) target = $region13
    $region12: #{net_forward.1} parent=1 // pred_region
      _
    $region13: #{net_forward.1} parent=1 // pred_fallthru
      _
    // Predicated region
    $region14: #{net_forward.1} parent=1 // pred_check
      _
    $region15: #{net_forward.1} parent=1 // pred_check_branch
      %46 = sbr.rel (0) target = $region17
    $region16: #{net_forward.1} parent=1 // pred_region
      %48 = vsyncadd [#allocation5], 0
      %s49 = sshll.u32 %s3, 4
      %s50 = int_to_ptr.hbm [resolvable:$true] %s49
      %s51 = sshll.u32 [#allocation6], 4
      %s52 = int_to_ptr.vmem [resolvable:$true] %s51
      %57 = dma.hbm_to_vmem [thread:$0]  %s50, 8192, %s52, [#allocation5], 128, 128, 8
    $region17: #{net_forward.1} parent=1 // pred_fallthru
      _
    // Predicated region
    $region18: #{net_forward.1} parent=1 // pred_check
      _
    $region19: #{net_forward.1} parent=1 // pred_check_branch
      %59 = sbr.rel (0) target = $region21
    $region20: #{net_forward.1} parent=1 // pred_region
      _
    $region21: #{net_forward.1} parent=1 // pred_fallthru
      _
    // Predicated region
    $region22: #{net_forward.1} parent=1 // pred_check
      _
    $region23: #{net_forward.1} parent=1 // pred_check_branch
      %61 = sbr.rel (0) target = $region25
    $region24: #{net_forward.1} parent=1 // pred_region
      %63 = vsyncadd [#allocation8], 0
      %s64 = sshll.u32 %s5, 4
      %s65 = int_to_ptr.hbm [resolvable:$true] %s64
      %s66 = sshll.u32 [#allocation7], 4
      %s67 = int_to_ptr.vmem [resolvable:$true] %s66
      %72 = dma.hbm_to_vmem [thread:$0]  %s65, 2048, %s67, [#allocation8], 64, 64, 4
    $region25: #{net_forward.1} parent=1 // pred_fallthru
      _
    // Predicated region
    $region26: #{net_forward.1} parent=1 // pred_check
      _
    $region27: #{net_forward.1} parent=1 // pred_check_branch
      %74 = sbr.rel (0) target = $region29
    $region28: #{net_forward.1} parent=1 // pred_region
      _
    $region29: #{net_forward.1} parent=1 // pred_fallthru
      _
    // Predicated region
    $region30: #{net_forward.1} parent=1 // pred_check
      _
    $region31: #{net_forward.1} parent=1 // pred_check_branch
      %76 = sbr.rel (0) target = $region33
    $region32: #{net_forward.1} parent=1 // pred_region
      _
    $region33: #{net_forward.1} parent=1 // pred_fallthru
      _
    // Predicated region
    $region34: #{net_forward.1} parent=1 // pred_check
      _
    $region35: #{net_forward.1} parent=1 // pred_check_branch
      %78 = sbr.rel (0) target = $region37
    $region36: #{net_forward.1} parent=1 // pred_region
      _
    $region37: #{net_forward.1} parent=1 // pred_fallthru
      _
    // Predicated region
    $region38: #{net_forward.1} parent=1 // pred_check
      _
    $region39: #{net_forward.1} parent=1 // pred_check_branch
      %80 = sbr.rel (0) target = $region41
    $region40: #{net_forward.1} parent=1 // pred_region
      %82 = dma.done [#allocation3], 3584
    $region41: #{net_forward.1} parent=1 // pred_fallthru
      _
    // Predicated region
    $region42: #{net_forward.1} parent=1 // pred_check
      _
    $region43: #{net_forward.1} parent=1 // pred_check_branch
      %84 = sbr.rel (0) target = $region45
    $region44: #{net_forward.1} parent=1 // pred_region
      %86 = dma.done [#allocation5], 25088
    $region45: #{net_forward.1} parent=1 // pred_fallthru
      _
    // Predicated region
    $region46: #{net_forward.1} parent=1 // pred_check
      _
    $region47: #{net_forward.1} parent=1 // pred_check_branch
      %88 = sbr.rel (0) target = $region49
    $region48: #{net_forward.1} parent=1 // pred_region
      %90 = dma.done [#allocation5], 8192
    $region49: #{net_forward.1} parent=1 // pred_fallthru
      _
    // Predicated region
    $region50: #{net_forward.1} parent=1 // pred_check
      _
    $region51: #{net_forward.1} parent=1 // pred_check_branch
      %92 = sbr.rel (0) target = $region53
    $region52: #{net_forward.1} parent=1 // pred_region
      %94 = dma.done [#allocation8], 2048
    $region53: #{net_forward.1} parent=1 // pred_fallthru
      _
    %v96 = vld [vmem:[#allocation2] sm:$0xff]
    %v97 = vld [vmem:[#allocation2 + $0x8] sm:$0xff]
    %v98 = vld [vmem:[#allocation2 + $0x10] sm:$0xff]
    %v99 = vld [vmem:[#allocation2 + $0x18] sm:$0xff]
    %v100 = vld [vmem:[#allocation2 + $0x20] sm:$0xff]
    %v101 = vld [vmem:[#allocation2 + $0x28] sm:$0xff]
    %v102 = vld [vmem:[#allocation2 + $0x30] sm:$0xff]
    %v103 = vld [vmem:[#allocation2 + $0x38] sm:$0xff]
    %v104 = vld [vmem:[#allocation2 + $0x40] sm:$0xff]
    %v105 = vld [vmem:[#allocation2 + $0x48] sm:$0xff]
    %v106 = vld [vmem:[#allocation2 + $0x50] sm:$0xff]
    %v107 = vld [vmem:[#allocation2 + $0x58] sm:$0xff]
    %v108 = vld [vmem:[#allocation2 + $0x60] sm:$0xff]
    %v109 = vld [vmem:[#allocation2 + $0x68] sm:$0xff]
    %v110 = vld [vmem:[#allocation2 + $0x70] sm:$0xff]
    %v111 = vld [vmem:[#allocation2 + $0x78] sm:$0xff]
    %v112 = vld [vmem:[#allocation2 + $0x80] sm:$0xff]
    %v113 = vld [vmem:[#allocation2 + $0x88] sm:$0xff]
    %v114 = vld [vmem:[#allocation2 + $0x90] sm:$0xff]
    %v115 = vld [vmem:[#allocation2 + $0x98] sm:$0xff]
    %v116 = vld [vmem:[#allocation2 + $0xa0] sm:$0xff]
    %v117 = vld [vmem:[#allocation2 + $0xa8] sm:$0xff]
    %v118 = vld [vmem:[#allocation2 + $0xb0] sm:$0xff]
    %v119 = vld [vmem:[#allocation2 + $0xb8] sm:$0xff]
    %v120 = vld [vmem:[#allocation2 + $0xc0] sm:$0xff]
    %v121 = vld [vmem:[#allocation2 + $0xc8] sm:$0xff]
    %v122 = vld [vmem:[#allocation2 + $0xd0] sm:$0xff]
    %v123 = vld [vmem:[#allocation2 + $0xd8] sm:$0xff]
    %v124 = vpack.c.bf16 %v103, %v96
    %v125 = vpack.c.bf16 %v104, %v97
    %v126 = vpack.c.bf16 %v105, %v98
    %v127 = vpack.c.bf16 %v106, %v99
    %v128 = vpack.c.bf16 %v107, %v100
    %v129 = vpack.c.bf16 %v108, %v101
    %v130 = vpack.c.bf16 %v109, %v102
    %v131 = vpack.c.bf16 %v117, %v110
    %v132 = vpack.c.bf16 %v118, %v111
    %v133 = vpack.c.bf16 %v119, %v112
    %v134 = vpack.c.bf16 %v120, %v113
    %v135 = vpack.c.bf16 %v121, %v114
    %v136 = vpack.c.bf16 %v122, %v115
    %v137 = vpack.c.bf16 %v123, %v116
    %v138 = vld [vmem:[#allocation4] sm:$0xff]
    %v139 = vld [vmem:[#allocation4 + $0x8] sm:$0xff]
    %v140 = vld [vmem:[#allocation4 + $0x10] sm:$0xff]
    %v141 = vld [vmem:[#allocation4 + $0x18] sm:$0xff]
    %v142 = vld [vmem:[#allocation4 + $0x20] sm:$0xff]
    %v143 = vld [vmem:[#allocation4 + $0x28] sm:$0xff]
    %v144 = vld [vmem:[#allocation4 + $0x30] sm:$0xff]
    %v145 = vld [vmem:[#allocation4 + $0x38] sm:$0xff]
    %v146 = vld [vmem:[#allocation4 + $0x40] sm:$0xff]
    %v147 = vld [vmem:[#allocation4 + $0x48] sm:$0xff]
    %v148 = vld [vmem:[#allocation4 + $0x50] sm:$0xff]
    %v149 = vld [vmem:[#allocation4 + $0x58] sm:$0xff]
    %v150 = vld [vmem:[#allocation4 + $0x60] sm:$0xff]
    %v151 = vld [vmem:[#allocation4 + $0x68] sm:$0xff]
    %v152 = vld [vmem:[#allocation4 + $0x70] sm:$0xff]
    %v153 = vld [vmem:[#allocation4 + $0x78] sm:$0xff]
    %v154 = vld [vmem:[#allocation4 + $0x80] sm:$0xff]
    %v155 = vld [vmem:[#allocation4 + $0x88] sm:$0xff]
    %v156 = vld [vmem:[#allocation4 + $0x90] sm:$0xff]
    %v157 = vld [vmem:[#allocation4 + $0x98] sm:$0xff]
    %v158 = vld [vmem:[#allocation4 + $0xa0] sm:$0xff]
    %v159 = vld [vmem:[#allocation4 + $0xa8] sm:$0xff]
    %v160 = vld [vmem:[#allocation4 + $0xb0] sm:$0xff]
    %v161 = vld [vmem:[#allocation4 + $0xb8] sm:$0xff]
    %v162 = vld [vmem:[#allocation4 + $0xc0] sm:$0xff]
    %v163 = vld [vmem:[#allocation4 + $0xc8] sm:$0xff]
    %v164 = vld [vmem:[#allocation4 + $0xd0] sm:$0xff]
    %v165 = vld [vmem:[#allocation4 + $0xd8] sm:$0xff]
    %v166 = vld [vmem:[#allocation4 + $0xe0] sm:$0xff]
    %v167 = vld [vmem:[#allocation4 + $0xe8] sm:$0xff]
    %v168 = vld [vmem:[#allocation4 + $0xf0] sm:$0xff]
    %v169 = vld [vmem:[#allocation4 + $0xf8] sm:$0xff]
    %v170 = vld [vmem:[#allocation4 + $0x100] sm:$0xff]
    %v171 = vld [vmem:[#allocation4 + $0x108] sm:$0xff]
    %v172 = vld [vmem:[#allocation4 + $0x110] sm:$0xff]
    %v173 = vld [vmem:[#allocation4 + $0x118] sm:$0xff]
    %v174 = vld [vmem:[#allocation4 + $0x120] sm:$0xff]
    %v175 = vld [vmem:[#allocation4 + $0x128] sm:$0xff]
    %v176 = vld [vmem:[#allocation4 + $0x130] sm:$0xff]
    %v177 = vld [vmem:[#allocation4 + $0x138] sm:$0xff]
    %v178 = vld [vmem:[#allocation4 + $0x140] sm:$0xff]
    %v179 = vld [vmem:[#allocation4 + $0x148] sm:$0xff]
    %v180 = vld [vmem:[#allocation4 + $0x150] sm:$0xff]
    %v181 = vld [vmem:[#allocation4 + $0x158] sm:$0xff]
    %v182 = vld [vmem:[#allocation4 + $0x160] sm:$0xff]
    %v183 = vld [vmem:[#allocation4 + $0x168] sm:$0xff]
    %v184 = vld [vmem:[#allocation4 + $0x170] sm:$0xff]
    %v185 = vld [vmem:[#allocation4 + $0x178] sm:$0xff]
    %v186 = vld [vmem:[#allocation4 + $0x180] sm:$0xff]
    %v187 = vld [vmem:[#allocation4 + $0x188] sm:$0xff]
    %v188 = vld [vmem:[#allocation4 + $0x190] sm:$0xff]
    %v189 = vld [vmem:[#allocation4 + $0x198] sm:$0xff]
    %v190 = vld [vmem:[#allocation4 + $0x1a0] sm:$0xff]
    %v191 = vld [vmem:[#allocation4 + $0x1a8] sm:$0xff]
    %v192 = vld [vmem:[#allocation4 + $0x1b0] sm:$0xff]
    %v193 = vld [vmem:[#allocation4 + $0x1b8] sm:$0xff]
    %v194 = vld [vmem:[#allocation4 + $0x1c0] sm:$0xff]
    %v195 = vld [vmem:[#allocation4 + $0x1c8] sm:$0xff]
    %v196 = vld [vmem:[#allocation4 + $0x1d0] sm:$0xff]
    %v197 = vld [vmem:[#allocation4 + $0x1d8] sm:$0xff]
    %v198 = vld [vmem:[#allocation4 + $0x1e0] sm:$0xff]
    %v199 = vld [vmem:[#allocation4 + $0x1e8] sm:$0xff]
    %v200 = vld [vmem:[#allocation4 + $0x1f0] sm:$0xff]
    %v201 = vld [vmem:[#allocation4 + $0x1f8] sm:$0xff]
    %v202 = vld [vmem:[#allocation4 + $0x200] sm:$0xff]
    %v203 = vld [vmem:[#allocation4 + $0x208] sm:$0xff]
    %v204 = vld [vmem:[#allocation4 + $0x210] sm:$0xff]
    %v205 = vld [vmem:[#allocation4 + $0x218] sm:$0xff]
    %v206 = vld [vmem:[#allocation4 + $0x220] sm:$0xff]
    %v207 = vld [vmem:[#allocation4 + $0x228] sm:$0xff]
    %v208 = vld [vmem:[#allocation4 + $0x230] sm:$0xff]
    %v209 = vld [vmem:[#allocation4 + $0x238] sm:$0xff]
    %v210 = vld [vmem:[#allocation4 + $0x240] sm:$0xff]
    %v211 = vld [vmem:[#allocation4 + $0x248] sm:$0xff]
    %v212 = vld [vmem:[#allocation4 + $0x250] sm:$0xff]
    %v213 = vld [vmem:[#allocation4 + $0x258] sm:$0xff]
    %v214 = vld [vmem:[#allocation4 + $0x260] sm:$0xff]
    %v215 = vld [vmem:[#allocation4 + $0x268] sm:$0xff]
    %v216 = vld [vmem:[#allocation4 + $0x270] sm:$0xff]
    %v217 = vld [vmem:[#allocation4 + $0x278] sm:$0xff]
    %v218 = vld [vmem:[#allocation4 + $0x280] sm:$0xff]
    %v219 = vld [vmem:[#allocation4 + $0x288] sm:$0xff]
    %v220 = vld [vmem:[#allocation4 + $0x290] sm:$0xff]
    %v221 = vld [vmem:[#allocation4 + $0x298] sm:$0xff]
    %v222 = vld [vmem:[#allocation4 + $0x2a0] sm:$0xff]
    %v223 = vld [vmem:[#allocation4 + $0x2a8] sm:$0xff]
    %v224 = vld [vmem:[#allocation4 + $0x2b0] sm:$0xff]
    %v225 = vld [vmem:[#allocation4 + $0x2b8] sm:$0xff]
    %v226 = vld [vmem:[#allocation4 + $0x2c0] sm:$0xff]
    %v227 = vld [vmem:[#allocation4 + $0x2c8] sm:$0xff]
    %v228 = vld [vmem:[#allocation4 + $0x2d0] sm:$0xff]
    %v229 = vld [vmem:[#allocation4 + $0x2d8] sm:$0xff]
    %v230 = vld [vmem:[#allocation4 + $0x2e0] sm:$0xff]
    %v231 = vld [vmem:[#allocation4 + $0x2e8] sm:$0xff]
    %v232 = vld [vmem:[#allocation4 + $0x2f0] sm:$0xff]
    %v233 = vld [vmem:[#allocation4 + $0x2f8] sm:$0xff]
    %v234 = vld [vmem:[#allocation4 + $0x300] sm:$0xff]
    %v235 = vld [vmem:[#allocation4 + $0x308] sm:$0xff]
    %v236 = vld [vmem:[#allocation4 + $0x310] sm:$0xff]
    %v237 = vld [vmem:[#allocation4 + $0x318] sm:$0xff]
    %v238 = vld [vmem:[#allocation4 + $0x320] sm:$0xff]
    %v239 = vld [vmem:[#allocation4 + $0x328] sm:$0xff]
    %v240 = vld [vmem:[#allocation4 + $0x330] sm:$0xff]
    %v241 = vld [vmem:[#allocation4 + $0x338] sm:$0xff]
    %v242 = vld [vmem:[#allocation4 + $0x340] sm:$0xff]
    %v243 = vld [vmem:[#allocation4 + $0x348] sm:$0xff]
    %v244 = vld [vmem:[#allocation4 + $0x350] sm:$0xff]
    %v245 = vld [vmem:[#allocation4 + $0x358] sm:$0xff]
    %v246 = vld [vmem:[#allocation4 + $0x360] sm:$0xff]
    %v247 = vld [vmem:[#allocation4 + $0x368] sm:$0xff]
    %v248 = vld [vmem:[#allocation4 + $0x370] sm:$0xff]
    %v249 = vld [vmem:[#allocation4 + $0x378] sm:$0xff]
    %v250 = vld [vmem:[#allocation4 + $0x380] sm:$0xff]
    %v251 = vld [vmem:[#allocation4 + $0x388] sm:$0xff]
    %v252 = vld [vmem:[#allocation4 + $0x390] sm:$0xff]
    %v253 = vld [vmem:[#allocation4 + $0x398] sm:$0xff]
    %v254 = vld [vmem:[#allocation4 + $0x3a0] sm:$0xff]
    %v255 = vld [vmem:[#allocation4 + $0x3a8] sm:$0xff]
    %v256 = vld [vmem:[#allocation4 + $0x3b0] sm:$0xff]
    %v257 = vld [vmem:[#allocation4 + $0x3b8] sm:$0xff]
    %v258 = vld [vmem:[#allocation4 + $0x3c0] sm:$0xff]
    %v259 = vld [vmem:[#allocation4 + $0x3c8] sm:$0xff]
    %v260 = vld [vmem:[#allocation4 + $0x3d0] sm:$0xff]
    %v261 = vld [vmem:[#allocation4 + $0x3d8] sm:$0xff]
    %v262 = vld [vmem:[#allocation4 + $0x3e0] sm:$0xff]
    %v263 = vld [vmem:[#allocation4 + $0x3e8] sm:$0xff]
    %v264 = vld [vmem:[#allocation4 + $0x3f0] sm:$0xff]
    %v265 = vld [vmem:[#allocation4 + $0x3f8] sm:$0xff]
    %v266 = vld [vmem:[#allocation4 + $0x400] sm:$0xff]
    %v267 = vld [vmem:[#allocation4 + $0x408] sm:$0xff]
    %v268 = vld [vmem:[#allocation4 + $0x410] sm:$0xff]
    %v269 = vld [vmem:[#allocation4 + $0x418] sm:$0xff]
    %v270 = vld [vmem:[#allocation4 + $0x420] sm:$0xff]
    %v271 = vld [vmem:[#allocation4 + $0x428] sm:$0xff]
    %v272 = vld [vmem:[#allocation4 + $0x430] sm:$0xff]
    %v273 = vld [vmem:[#allocation4 + $0x438] sm:$0xff]
    %v274 = vld [vmem:[#allocation4 + $0x440] sm:$0xff]
    %v275 = vld [vmem:[#allocation4 + $0x448] sm:$0xff]
    %v276 = vld [vmem:[#allocation4 + $0x450] sm:$0xff]
    %v277 = vld [vmem:[#allocation4 + $0x458] sm:$0xff]
    %v278 = vld [vmem:[#allocation4 + $0x460] sm:$0xff]
    %v279 = vld [vmem:[#allocation4 + $0x468] sm:$0xff]
    %v280 = vld [vmem:[#allocation4 + $0x470] sm:$0xff]
    %v281 = vld [vmem:[#allocation4 + $0x478] sm:$0xff]
    %v282 = vld [vmem:[#allocation4 + $0x480] sm:$0xff]
    %v283 = vld [vmem:[#allocation4 + $0x488] sm:$0xff]
    %v284 = vld [vmem:[#allocation4 + $0x490] sm:$0xff]
    %v285 = vld [vmem:[#allocation4 + $0x498] sm:$0xff]
    %v286 = vld [vmem:[#allocation4 + $0x4a0] sm:$0xff]
    %v287 = vld [vmem:[#allocation4 + $0x4a8] sm:$0xff]
    %v288 = vld [vmem:[#allocation4 + $0x4b0] sm:$0xff]
    %v289 = vld [vmem:[#allocation4 + $0x4b8] sm:$0xff]
    %v290 = vld [vmem:[#allocation4 + $0x4c0] sm:$0xff]
    %v291 = vld [vmem:[#allocation4 + $0x4c8] sm:$0xff]
    %v292 = vld [vmem:[#allocation4 + $0x4d0] sm:$0xff]
    %v293 = vld [vmem:[#allocation4 + $0x4d8] sm:$0xff]
    %v294 = vld [vmem:[#allocation4 + $0x4e0] sm:$0xff]
    %v295 = vld [vmem:[#allocation4 + $0x4e8] sm:$0xff]
    %v296 = vld [vmem:[#allocation4 + $0x4f0] sm:$0xff]
    %v297 = vld [vmem:[#allocation4 + $0x4f8] sm:$0xff]
    %v298 = vld [vmem:[#allocation4 + $0x500] sm:$0xff]
    %v299 = vld [vmem:[#allocation4 + $0x508] sm:$0xff]
    %v300 = vld [vmem:[#allocation4 + $0x510] sm:$0xff]
    %v301 = vld [vmem:[#allocation4 + $0x518] sm:$0xff]
    %v302 = vld [vmem:[#allocation4 + $0x520] sm:$0xff]
    %v303 = vld [vmem:[#allocation4 + $0x528] sm:$0xff]
    %v304 = vld [vmem:[#allocation4 + $0x530] sm:$0xff]
    %v305 = vld [vmem:[#allocation4 + $0x538] sm:$0xff]
    %v306 = vld [vmem:[#allocation4 + $0x540] sm:$0xff]
    %v307 = vld [vmem:[#allocation4 + $0x548] sm:$0xff]
    %v308 = vld [vmem:[#allocation4 + $0x550] sm:$0xff]
    %v309 = vld [vmem:[#allocation4 + $0x558] sm:$0xff]
    %v310 = vld [vmem:[#allocation4 + $0x560] sm:$0xff]
    %v311 = vld [vmem:[#allocation4 + $0x568] sm:$0xff]
    %v312 = vld [vmem:[#allocation4 + $0x570] sm:$0xff]
    %v313 = vld [vmem:[#allocation4 + $0x578] sm:$0xff]
    %v314 = vld [vmem:[#allocation4 + $0x580] sm:$0xff]
    %v315 = vld [vmem:[#allocation4 + $0x588] sm:$0xff]
    %v316 = vld [vmem:[#allocation4 + $0x590] sm:$0xff]
    %v317 = vld [vmem:[#allocation4 + $0x598] sm:$0xff]
    %v318 = vld [vmem:[#allocation4 + $0x5a0] sm:$0xff]
    %v319 = vld [vmem:[#allocation4 + $0x5a8] sm:$0xff]
    %v320 = vld [vmem:[#allocation4 + $0x5b0] sm:$0xff]
    %v321 = vld [vmem:[#allocation4 + $0x5b8] sm:$0xff]
    %v322 = vld [vmem:[#allocation4 + $0x5c0] sm:$0xff]
    %v323 = vld [vmem:[#allocation4 + $0x5c8] sm:$0xff]
    %v324 = vld [vmem:[#allocation4 + $0x5d0] sm:$0xff]
    %v325 = vld [vmem:[#allocation4 + $0x5d8] sm:$0xff]
    %v326 = vld [vmem:[#allocation4 + $0x5e0] sm:$0xff]
    %v327 = vld [vmem:[#allocation4 + $0x5e8] sm:$0xff]
    %v328 = vld [vmem:[#allocation4 + $0x5f0] sm:$0xff]
    %v329 = vld [vmem:[#allocation4 + $0x5f8] sm:$0xff]
    %v330 = vld [vmem:[#allocation4 + $0x600] sm:$0xff]
    %v331 = vld [vmem:[#allocation4 + $0x608] sm:$0xff]
    %v332 = vld [vmem:[#allocation4 + $0x610] sm:$0xff]
    %v333 = vld [vmem:[#allocation4 + $0x618] sm:$0xff]
    %v334 = vld [vmem:[%s2] sm:$0xf]
    %v336 = vperm.slane %v334, 0
    %v337 = vperm.slane %v334, 1
    %v338 = vperm.slane %v334, 2
    %v339 = vperm.slane %v334, 3
    %v540 = vunpack.c.l.b16 %v138
    %v541 = vunpack.c.h.b16 %v138
    %v542 = vunpack.c.l.b16 %v139
    %v543 = vunpack.c.h.b16 %v139
    %v544 = vunpack.c.l.b16 %v140
    %v545 = vunpack.c.h.b16 %v140
    %v546 = vunpack.c.l.b16 %v141
    %v547 = vunpack.c.h.b16 %v141
    %v548 = vunpack.c.l.b16 %v142
    %v549 = vunpack.c.h.b16 %v142
    %v550 = vunpack.c.l.b16 %v143
    %v551 = vunpack.c.h.b16 %v143
    %v552 = vunpack.c.l.b16 %v144
    %v553 = vunpack.c.h.b16 %v144
    %v554 = vunpack.c.l.b16 %v145
    %v555 = vunpack.c.h.b16 %v145
    %v556 = vunpack.c.l.b16 %v146
    %v557 = vunpack.c.h.b16 %v146
    %v558 = vunpack.c.l.b16 %v147
    %v559 = vunpack.c.h.b16 %v147
    %v560 = vunpack.c.l.b16 %v148
    %v561 = vunpack.c.h.b16 %v148
    %v562 = vunpack.c.l.b16 %v149
    %v563 = vunpack.c.h.b16 %v149
    %v564 = vunpack.c.l.b16 %v150
    %v565 = vunpack.c.h.b16 %v150
    %v566 = vunpack.c.l.b16 %v151
    %v567 = vunpack.c.h.b16 %v151
    %v568 = vunpack.c.l.b16 %v152
    %v569 = vunpack.c.h.b16 %v152
    %v570 = vunpack.c.l.b16 %v153
    %v571 = vunpack.c.h.b16 %v153
    %v572 = vunpack.c.l.b16 %v154
    %v573 = vunpack.c.h.b16 %v154
    %v574 = vunpack.c.l.b16 %v155
    %v575 = vunpack.c.h.b16 %v155
    %v576 = vunpack.c.l.b16 %v156
    %v577 = vunpack.c.h.b16 %v156
    %v578 = vunpack.c.l.b16 %v157
    %v579 = vunpack.c.h.b16 %v157
    %v580 = vunpack.c.l.b16 %v158
    %v581 = vunpack.c.h.b16 %v158
    %v582 = vunpack.c.l.b16 %v159
    %v583 = vunpack.c.h.b16 %v159
    %v584 = vunpack.c.l.b16 %v160
    %v585 = vunpack.c.h.b16 %v160
    %v586 = vunpack.c.l.b16 %v161
    %v587 = vunpack.c.h.b16 %v161
    %v588 = vunpack.c.l.b16 %v162
    %v589 = vunpack.c.h.b16 %v162
    %v590 = vunpack.c.l.b16 %v163
    %v591 = vunpack.c.h.b16 %v163
    %v592 = vunpack.c.l.b16 %v164
    %v593 = vunpack.c.h.b16 %v164
    %v594 = vunpack.c.l.b16 %v165
    %v595 = vunpack.c.h.b16 %v165
    %v596 = vunpack.c.l.b16 %v166
    %v597 = vunpack.c.h.b16 %v166
    %v598 = vunpack.c.l.b16 %v167
    %v599 = vunpack.c.h.b16 %v167
    %v600 = vunpack.c.l.b16 %v168
    %v601 = vunpack.c.h.b16 %v168
    %v602 = vunpack.c.l.b16 %v169
    %v603 = vunpack.c.h.b16 %v169
    %v604 = vunpack.c.l.b16 %v170
    %v605 = vunpack.c.h.b16 %v170
    %v606 = vunpack.c.l.b16 %v171
    %v607 = vunpack.c.h.b16 %v171
    %v608 = vunpack.c.l.b16 %v172
    %v609 = vunpack.c.h.b16 %v172
    %v610 = vunpack.c.l.b16 %v173
    %v611 = vunpack.c.h.b16 %v173
    %v612 = vunpack.c.l.b16 %v174
    %v613 = vunpack.c.h.b16 %v174
    %v614 = vunpack.c.l.b16 %v175
    %v615 = vunpack.c.h.b16 %v175
    %v616 = vunpack.c.l.b16 %v176
    %v617 = vunpack.c.h.b16 %v176
    %v618 = vunpack.c.l.b16 %v177
    %v619 = vunpack.c.h.b16 %v177
    %v620 = vunpack.c.l.b16 %v178
    %v621 = vunpack.c.h.b16 %v178
    %v622 = vunpack.c.l.b16 %v179
    %v623 = vunpack.c.h.b16 %v179
    %v624 = vunpack.c.l.b16 %v180
    %v625 = vunpack.c.h.b16 %v180
    %v626 = vunpack.c.l.b16 %v181
    %v627 = vunpack.c.h.b16 %v181
    %v628 = vunpack.c.l.b16 %v182
    %v629 = vunpack.c.h.b16 %v182
    %v630 = vunpack.c.l.b16 %v183
    %v631 = vunpack.c.h.b16 %v183
    %v632 = vunpack.c.l.b16 %v184
    %v633 = vunpack.c.h.b16 %v184
    %v634 = vunpack.c.l.b16 %v185
    %v635 = vunpack.c.h.b16 %v185
    %v636 = vunpack.c.l.b16 %v186
    %v637 = vunpack.c.h.b16 %v186
    %v638 = vunpack.c.l.b16 %v187
    %v639 = vunpack.c.h.b16 %v187
    %v640 = vunpack.c.l.b16 %v188
    %v641 = vunpack.c.h.b16 %v188
    %v642 = vunpack.c.l.b16 %v189
    %v643 = vunpack.c.h.b16 %v189
    %v644 = vunpack.c.l.b16 %v190
    %v645 = vunpack.c.h.b16 %v190
    %v646 = vunpack.c.l.b16 %v191
    %v647 = vunpack.c.h.b16 %v191
    %v648 = vunpack.c.l.b16 %v192
    %v649 = vunpack.c.h.b16 %v192
    %v650 = vunpack.c.l.b16 %v193
    %v651 = vunpack.c.h.b16 %v193
    %v652 = vunpack.c.l.b16 %v194
    %v653 = vunpack.c.h.b16 %v194
    %v654 = vunpack.c.l.b16 %v195
    %v655 = vunpack.c.h.b16 %v195
    %v656 = vunpack.c.l.b16 %v196
    %v657 = vunpack.c.h.b16 %v196
    %v658 = vunpack.c.l.b16 %v197
    %v659 = vunpack.c.h.b16 %v197
    %v660 = vunpack.c.l.b16 %v198
    %v661 = vunpack.c.h.b16 %v198
    %v662 = vunpack.c.l.b16 %v199
    %v663 = vunpack.c.h.b16 %v199
    %v664 = vunpack.c.l.b16 %v200
    %v665 = vunpack.c.h.b16 %v200
    %v666 = vunpack.c.l.b16 %v201
    %v667 = vunpack.c.h.b16 %v201
    %v668 = vunpack.c.l.b16 %v202
    %v669 = vunpack.c.h.b16 %v202
    %v670 = vunpack.c.l.b16 %v203
    %v671 = vunpack.c.h.b16 %v203
    %v672 = vunpack.c.l.b16 %v204
    %v673 = vunpack.c.h.b16 %v204
    %v674 = vunpack.c.l.b16 %v205
    %v675 = vunpack.c.h.b16 %v205
    %v676 = vunpack.c.l.b16 %v206
    %v677 = vunpack.c.h.b16 %v206
    %v678 = vunpack.c.l.b16 %v207
    %v679 = vunpack.c.h.b16 %v207
    %v680 = vunpack.c.l.b16 %v208
    %v681 = vunpack.c.h.b16 %v208
    %v682 = vunpack.c.l.b16 %v209
    %v683 = vunpack.c.h.b16 %v209
    %v684 = vunpack.c.l.b16 %v210
    %v685 = vunpack.c.h.b16 %v210
    %v686 = vunpack.c.l.b16 %v211
    %v687 = vunpack.c.h.b16 %v211
    %v688 = vunpack.c.l.b16 %v212
    %v689 = vunpack.c.h.b16 %v212
    %v690 = vunpack.c.l.b16 %v213
    %v691 = vunpack.c.h.b16 %v213
    %v692 = vunpack.c.l.b16 %v214
    %v693 = vunpack.c.h.b16 %v214
    %v694 = vunpack.c.l.b16 %v215
    %v695 = vunpack.c.h.b16 %v215
    %v696 = vunpack.c.l.b16 %v216
    %v697 = vunpack.c.h.b16 %v216
    %v698 = vunpack.c.l.b16 %v217
    %v699 = vunpack.c.h.b16 %v217
    %v700 = vunpack.c.l.b16 %v218
    %v701 = vunpack.c.h.b16 %v218
    %v702 = vunpack.c.l.b16 %v219
    %v703 = vunpack.c.h.b16 %v219
    %v704 = vunpack.c.l.b16 %v220
    %v705 = vunpack.c.h.b16 %v220
    %v706 = vunpack.c.l.b16 %v221
    %v707 = vunpack.c.h.b16 %v221
    %v708 = vunpack.c.l.b16 %v222
    %v709 = vunpack.c.h.b16 %v222
    %v710 = vunpack.c.l.b16 %v223
    %v711 = vunpack.c.h.b16 %v223
    %v712 = vunpack.c.l.b16 %v224
    %v713 = vunpack.c.h.b16 %v224
    %v714 = vunpack.c.l.b16 %v225
    %v715 = vunpack.c.h.b16 %v225
    %v716 = vunpack.c.l.b16 %v226
    %v717 = vunpack.c.h.b16 %v226
    %v718 = vunpack.c.l.b16 %v227
    %v719 = vunpack.c.h.b16 %v227
    %v720 = vunpack.c.l.b16 %v228
    %v721 = vunpack.c.h.b16 %v228
    %v722 = vunpack.c.l.b16 %v229
    %v723 = vunpack.c.h.b16 %v229
    %v724 = vunpack.c.l.b16 %v230
    %v725 = vunpack.c.h.b16 %v230
    %v726 = vunpack.c.l.b16 %v231
    %v727 = vunpack.c.h.b16 %v231
    %v728 = vunpack.c.l.b16 %v232
    %v729 = vunpack.c.h.b16 %v232
    %v730 = vunpack.c.l.b16 %v233
    %v731 = vunpack.c.h.b16 %v233
    %v732 = vunpack.c.l.b16 %v234
    %v733 = vunpack.c.h.b16 %v234
    %v734 = vunpack.c.l.b16 %v235
    %v735 = vunpack.c.h.b16 %v235
    %v736 = vunpack.c.l.b16 %v236
    %v737 = vunpack.c.h.b16 %v236
    %v738 = vunpack.c.l.b16 %v237
    %v739 = vunpack.c.h.b16 %v237
    %v740 = vunpack.c.l.b16 %v238
    %v741 = vunpack.c.h.b16 %v238
    %v742 = vunpack.c.l.b16 %v239
    %v743 = vunpack.c.h.b16 %v239
    %v744 = vunpack.c.l.b16 %v240
    %v745 = vunpack.c.h.b16 %v240
    %v746 = vunpack.c.l.b16 %v241
    %v747 = vunpack.c.h.b16 %v241
    %v748 = vunpack.c.l.b16 %v242
    %v749 = vunpack.c.h.b16 %v242
    %v750 = vunpack.c.l.b16 %v243
    %v751 = vunpack.c.h.b16 %v243
    %v752 = vunpack.c.l.b16 %v244
    %v753 = vunpack.c.h.b16 %v244
    %v754 = vunpack.c.l.b16 %v245
    %v755 = vunpack.c.h.b16 %v245
    %v756 = vunpack.c.l.b16 %v246
    %v757 = vunpack.c.h.b16 %v246
    %v758 = vunpack.c.l.b16 %v247
    %v759 = vunpack.c.h.b16 %v247
    %v760 = vunpack.c.l.b16 %v248
    %v761 = vunpack.c.h.b16 %v248
    %v762 = vunpack.c.l.b16 %v249
    %v763 = vunpack.c.h.b16 %v249
    %v764 = vunpack.c.l.b16 %v250
    %v765 = vunpack.c.h.b16 %v250
    %v766 = vunpack.c.l.b16 %v251
    %v767 = vunpack.c.h.b16 %v251
    %v768 = vunpack.c.l.b16 %v252
    %v769 = vunpack.c.h.b16 %v252
    %v770 = vunpack.c.l.b16 %v253
    %v771 = vunpack.c.h.b16 %v253
    %v772 = vunpack.c.l.b16 %v254
    %v773 = vunpack.c.h.b16 %v254
    %v774 = vunpack.c.l.b16 %v255
    %v775 = vunpack.c.h.b16 %v255
    %v776 = vunpack.c.l.b16 %v256
    %v777 = vunpack.c.h.b16 %v256
    %v778 = vunpack.c.l.b16 %v257
    %v779 = vunpack.c.h.b16 %v257
    %v780 = vunpack.c.l.b16 %v258
    %v781 = vunpack.c.h.b16 %v258
    %v782 = vunpack.c.l.b16 %v259
    %v783 = vunpack.c.h.b16 %v259
    %v784 = vunpack.c.l.b16 %v260
    %v785 = vunpack.c.h.b16 %v260
    %v786 = vunpack.c.l.b16 %v261
    %v787 = vunpack.c.h.b16 %v261
    %v788 = vunpack.c.l.b16 %v262
    %v789 = vunpack.c.h.b16 %v262
    %v790 = vunpack.c.l.b16 %v263
    %v791 = vunpack.c.h.b16 %v263
    %v792 = vunpack.c.l.b16 %v264
    %v793 = vunpack.c.h.b16 %v264
    %v794 = vunpack.c.l.b16 %v265
    %v795 = vunpack.c.h.b16 %v265
    %v796 = vunpack.c.l.b16 %v266
    %v797 = vunpack.c.h.b16 %v266
    %v798 = vunpack.c.l.b16 %v267
    %v799 = vunpack.c.h.b16 %v267
    %v800 = vunpack.c.l.b16 %v268
    %v801 = vunpack.c.h.b16 %v268
    %v802 = vunpack.c.l.b16 %v269
    %v803 = vunpack.c.h.b16 %v269
    %v804 = vunpack.c.l.b16 %v270
    %v805 = vunpack.c.h.b16 %v270
    %v806 = vunpack.c.l.b16 %v271
    %v807 = vunpack.c.h.b16 %v271
    %v808 = vunpack.c.l.b16 %v272
    %v809 = vunpack.c.h.b16 %v272
    %v810 = vunpack.c.l.b16 %v273
    %v811 = vunpack.c.h.b16 %v273
    %v812 = vunpack.c.l.b16 %v274
    %v813 = vunpack.c.h.b16 %v274
    %v814 = vunpack.c.l.b16 %v275
    %v815 = vunpack.c.h.b16 %v275
    %v816 = vunpack.c.l.b16 %v276
    %v817 = vunpack.c.h.b16 %v276
    %v818 = vunpack.c.l.b16 %v277
    %v819 = vunpack.c.h.b16 %v277
    %v820 = vunpack.c.l.b16 %v278
    %v821 = vunpack.c.h.b16 %v278
    %v822 = vunpack.c.l.b16 %v279
    %v823 = vunpack.c.h.b16 %v279
    %v824 = vunpack.c.l.b16 %v280
    %v825 = vunpack.c.h.b16 %v280
    %v826 = vunpack.c.l.b16 %v281
    %v827 = vunpack.c.h.b16 %v281
    %v828 = vunpack.c.l.b16 %v282
    %v829 = vunpack.c.h.b16 %v282
    %v830 = vunpack.c.l.b16 %v283
    %v831 = vunpack.c.h.b16 %v283
    %v832 = vunpack.c.l.b16 %v284
    %v833 = vunpack.c.h.b16 %v284
    %v834 = vunpack.c.l.b16 %v285
    %v835 = vunpack.c.h.b16 %v285
    %v836 = vunpack.c.l.b16 %v286
    %v837 = vunpack.c.h.b16 %v286
    %v838 = vunpack.c.l.b16 %v287
    %v839 = vunpack.c.h.b16 %v287
    %v840 = vunpack.c.l.b16 %v288
    %v841 = vunpack.c.h.b16 %v288
    %v842 = vunpack.c.l.b16 %v289
    %v843 = vunpack.c.h.b16 %v289
    %v844 = vunpack.c.l.b16 %v290
    %v845 = vunpack.c.h.b16 %v290
    %v846 = vunpack.c.l.b16 %v291
    %v847 = vunpack.c.h.b16 %v291
    %v848 = vunpack.c.l.b16 %v292
    %v849 = vunpack.c.h.b16 %v292
    %v850 = vunpack.c.l.b16 %v293
    %v851 = vunpack.c.h.b16 %v293
    %v852 = vunpack.c.l.b16 %v294
    %v853 = vunpack.c.h.b16 %v294
    %v854 = vunpack.c.l.b16 %v295
    %v855 = vunpack.c.h.b16 %v295
    %v856 = vunpack.c.l.b16 %v296
    %v857 = vunpack.c.h.b16 %v296
    %v858 = vunpack.c.l.b16 %v297
    %v859 = vunpack.c.h.b16 %v297
    %v860 = vunpack.c.l.b16 %v298
    %v861 = vunpack.c.h.b16 %v298
    %v862 = vunpack.c.l.b16 %v299
    %v863 = vunpack.c.h.b16 %v299
    %v864 = vunpack.c.l.b16 %v300
    %v865 = vunpack.c.h.b16 %v300
    %v866 = vunpack.c.l.b16 %v301
    %v867 = vunpack.c.h.b16 %v301
    %v868 = vunpack.c.l.b16 %v302
    %v869 = vunpack.c.h.b16 %v302
    %v870 = vunpack.c.l.b16 %v303
    %v871 = vunpack.c.h.b16 %v303
    %v872 = vunpack.c.l.b16 %v304
    %v873 = vunpack.c.h.b16 %v304
    %v874 = vunpack.c.l.b16 %v305
    %v875 = vunpack.c.h.b16 %v305
    %v876 = vunpack.c.l.b16 %v306
    %v877 = vunpack.c.h.b16 %v306
    %v878 = vunpack.c.l.b16 %v307
    %v879 = vunpack.c.h.b16 %v307
    %v880 = vunpack.c.l.b16 %v308
    %v881 = vunpack.c.h.b16 %v308
    %v882 = vunpack.c.l.b16 %v309
    %v883 = vunpack.c.h.b16 %v309
    %v884 = vunpack.c.l.b16 %v310
    %v885 = vunpack.c.h.b16 %v310
    %v886 = vunpack.c.l.b16 %v311
    %v887 = vunpack.c.h.b16 %v311
    %v888 = vunpack.c.l.b16 %v312
    %v889 = vunpack.c.h.b16 %v312
    %v890 = vunpack.c.l.b16 %v313
    %v891 = vunpack.c.h.b16 %v313
    %v892 = vunpack.c.l.b16 %v314
    %v893 = vunpack.c.h.b16 %v314
    %v894 = vunpack.c.l.b16 %v315
    %v895 = vunpack.c.h.b16 %v315
    %v896 = vunpack.c.l.b16 %v316
    %v897 = vunpack.c.h.b16 %v316
    %v898 = vunpack.c.l.b16 %v317
    %v899 = vunpack.c.h.b16 %v317
    %v900 = vunpack.c.l.b16 %v318
    %v901 = vunpack.c.h.b16 %v318
    %v902 = vunpack.c.l.b16 %v319
    %v903 = vunpack.c.h.b16 %v319
    %v904 = vunpack.c.l.b16 %v320
    %v905 = vunpack.c.h.b16 %v320
    %v906 = vunpack.c.l.b16 %v321
    %v907 = vunpack.c.h.b16 %v321
    %v908 = vunpack.c.l.b16 %v322
    %v909 = vunpack.c.h.b16 %v322
    %v910 = vunpack.c.l.b16 %v323
    %v911 = vunpack.c.h.b16 %v323
    %v912 = vunpack.c.l.b16 %v324
    %v913 = vunpack.c.h.b16 %v324
    %v914 = vunpack.c.l.b16 %v325
    %v915 = vunpack.c.h.b16 %v325
    %v916 = vunpack.c.l.b16 %v326
    %v917 = vunpack.c.h.b16 %v326
    %v918 = vunpack.c.l.b16 %v327
    %v919 = vunpack.c.h.b16 %v327
    %v920 = vunpack.c.l.b16 %v328
    %v921 = vunpack.c.h.b16 %v328
    %v922 = vunpack.c.l.b16 %v329
    %v923 = vunpack.c.h.b16 %v329
    %v924 = vunpack.c.l.b16 %v330
    %v925 = vunpack.c.h.b16 %v330
    %v926 = vunpack.c.l.b16 %v331
    %v927 = vunpack.c.h.b16 %v331
    %v928 = vunpack.c.l.b16 %v332
    %v929 = vunpack.c.h.b16 %v332
    %v930 = vunpack.c.l.b16 %v333
    %v931 = vunpack.c.h.b16 %v333
    %v932 = vpack.c.b16 %v544, %v540
    %v933 = vpack.c.b16 %v545, %v541
    %v934 = vpack.c.b16 %v546, %v542
    %v935 = vpack.c.b16 %v547, %v543
    %v936 = vpack.c.b16 %v552, %v548
    %v937 = vpack.c.b16 %v553, %v549
    %v938 = vpack.c.b16 %v554, %v550
    %v939 = vpack.c.b16 %v555, %v551
    %v940 = vpack.c.b16 %v560, %v556
    %v941 = vpack.c.b16 %v561, %v557
    %v942 = vpack.c.b16 %v562, %v558
    %v943 = vpack.c.b16 %v563, %v559
    %v944 = vpack.c.b16 %v568, %v564
    %v945 = vpack.c.b16 %v569, %v565
    %v946 = vpack.c.b16 %v570, %v566
    %v947 = vpack.c.b16 %v571, %v567
    %v948 = vpack.c.b16 %v576, %v572
    %v949 = vpack.c.b16 %v577, %v573
    %v950 = vpack.c.b16 %v578, %v574
    %v951 = vpack.c.b16 %v579, %v575
    %v952 = vpack.c.b16 %v584, %v580
    %v953 = vpack.c.b16 %v585, %v581
    %v954 = vpack.c.b16 %v586, %v582
    %v955 = vpack.c.b16 %v587, %v583
    %v956 = vpack.c.b16 %v592, %v588
    %v957 = vpack.c.b16 %v593, %v589
    %v958 = vpack.c.b16 %v594, %v590
    %v959 = vpack.c.b16 %v595, %v591
    %v960 = vpack.c.b16 %v600, %v596
    %v961 = vpack.c.b16 %v601, %v597
    %v962 = vpack.c.b16 %v602, %v598
    %v963 = vpack.c.b16 %v603, %v599
    %v964 = vpack.c.b16 %v608, %v604
    %v965 = vpack.c.b16 %v609, %v605
    %v966 = vpack.c.b16 %v610, %v606
    %v967 = vpack.c.b16 %v611, %v607
    %v968 = vpack.c.b16 %v616, %v612
    %v969 = vpack.c.b16 %v617, %v613
    %v970 = vpack.c.b16 %v618, %v614
    %v971 = vpack.c.b16 %v619, %v615
    %v972 = vpack.c.b16 %v624, %v620
    %v973 = vpack.c.b16 %v625, %v621
    %v974 = vpack.c.b16 %v626, %v622
    %v975 = vpack.c.b16 %v627, %v623
    %v976 = vpack.c.b16 %v632, %v628
    %v977 = vpack.c.b16 %v633, %v629
    %v978 = vpack.c.b16 %v634, %v630
    %v979 = vpack.c.b16 %v635, %v631
    %v980 = vpack.c.b16 %v640, %v636
    %v981 = vpack.c.b16 %v641, %v637
    %v982 = vpack.c.b16 %v642, %v638
    %v983 = vpack.c.b16 %v643, %v639
    %v984 = vpack.c.b16 %v648, %v644
    %v985 = vpack.c.b16 %v649, %v645
    %v986 = vpack.c.b16 %v650, %v646
    %v987 = vpack.c.b16 %v651, %v647
    %v988 = vpack.c.b16 %v656, %v652
    %v989 = vpack.c.b16 %v657, %v653
    %v990 = vpack.c.b16 %v658, %v654
    %v991 = vpack.c.b16 %v659, %v655
    %v992 = vpack.c.b16 %v664, %v660
    %v993 = vpack.c.b16 %v665, %v661
    %v994 = vpack.c.b16 %v666, %v662
    %v995 = vpack.c.b16 %v667, %v663
    %v996 = vpack.c.b16 %v672, %v668
    %v997 = vpack.c.b16 %v673, %v669
    %v998 = vpack.c.b16 %v674, %v670
    %v999 = vpack.c.b16 %v675, %v671
    %v1000 = vpack.c.b16 %v680, %v676
    %v1001 = vpack.c.b16 %v681, %v677
    %v1002 = vpack.c.b16 %v682, %v678
    %v1003 = vpack.c.b16 %v683, %v679
    %v1004 = vpack.c.b16 %v688, %v684
    %v1005 = vpack.c.b16 %v689, %v685
    %v1006 = vpack.c.b16 %v690, %v686
    %v1007 = vpack.c.b16 %v691, %v687
    %v1008 = vpack.c.b16 %v696, %v692
    %v1009 = vpack.c.b16 %v697, %v693
    %v1010 = vpack.c.b16 %v698, %v694
    %v1011 = vpack.c.b16 %v699, %v695
    %v1012 = vpack.c.b16 %v704, %v700
    %v1013 = vpack.c.b16 %v705, %v701
    %v1014 = vpack.c.b16 %v706, %v702
    %v1015 = vpack.c.b16 %v707, %v703
    %v1016 = vpack.c.b16 %v712, %v708
    %v1017 = vpack.c.b16 %v713, %v709
    %v1018 = vpack.c.b16 %v714, %v710
    %v1019 = vpack.c.b16 %v715, %v711
    %v1020 = vpack.c.b16 %v720, %v716
    %v1021 = vpack.c.b16 %v721, %v717
    %v1022 = vpack.c.b16 %v722, %v718
    %v1023 = vpack.c.b16 %v723, %v719
    %v1024 = vpack.c.b16 %v728, %v724
    %v1025 = vpack.c.b16 %v729, %v725
    %v1026 = vpack.c.b16 %v730, %v726
    %v1027 = vpack.c.b16 %v731, %v727
    %v1028 = vpack.c.b16 %v736, %v732
    %v1029 = vpack.c.b16 %v737, %v733
    %v1030 = vpack.c.b16 %v738, %v734
    %v1031 = vpack.c.b16 %v739, %v735
    %v1032 = vpack.c.b16 %v744, %v740
    %v1033 = vpack.c.b16 %v745, %v741
    %v1034 = vpack.c.b16 %v746, %v742
    %v1035 = vpack.c.b16 %v747, %v743
    %v1036 = vpack.c.b16 %v752, %v748
    %v1037 = vpack.c.b16 %v753, %v749
    %v1038 = vpack.c.b16 %v754, %v750
    %v1039 = vpack.c.b16 %v755, %v751
    %v1040 = vpack.c.b16 %v760, %v756
    %v1041 = vpack.c.b16 %v761, %v757
    %v1042 = vpack.c.b16 %v762, %v758
    %v1043 = vpack.c.b16 %v763, %v759
    %v1044 = vpack.c.b16 %v768, %v764
    %v1045 = vpack.c.b16 %v769, %v765
    %v1046 = vpack.c.b16 %v770, %v766
    %v1047 = vpack.c.b16 %v771, %v767
    %v1048 = vpack.c.b16 %v776, %v772
    %v1049 = vpack.c.b16 %v777, %v773
    %v1050 = vpack.c.b16 %v778, %v774
    %v1051 = vpack.c.b16 %v779, %v775
    %v1052 = vpack.c.b16 %v784, %v780
    %v1053 = vpack.c.b16 %v785, %v781
    %v1054 = vpack.c.b16 %v786, %v782
    %v1055 = vpack.c.b16 %v787, %v783
    %v1056 = vpack.c.b16 %v792, %v788
    %v1057 = vpack.c.b16 %v793, %v789
    %v1058 = vpack.c.b16 %v794, %v790
    %v1059 = vpack.c.b16 %v795, %v791
    %v1060 = vpack.c.b16 %v800, %v796
    %v1061 = vpack.c.b16 %v801, %v797
    %v1062 = vpack.c.b16 %v802, %v798
    %v1063 = vpack.c.b16 %v803, %v799
    %v1064 = vpack.c.b16 %v808, %v804
    %v1065 = vpack.c.b16 %v809, %v805
    %v1066 = vpack.c.b16 %v810, %v806
    %v1067 = vpack.c.b16 %v811, %v807
    %v1068 = vpack.c.b16 %v816, %v812
    %v1069 = vpack.c.b16 %v817, %v813
    %v1070 = vpack.c.b16 %v818, %v814
    %v1071 = vpack.c.b16 %v819, %v815
    %v1072 = vpack.c.b16 %v824, %v820
    %v1073 = vpack.c.b16 %v825, %v821
    %v1074 = vpack.c.b16 %v826, %v822
    %v1075 = vpack.c.b16 %v827, %v823
    %v1076 = vpack.c.b16 %v832, %v828
    %v1077 = vpack.c.b16 %v833, %v829
    %v1078 = vpack.c.b16 %v834, %v830
    %v1079 = vpack.c.b16 %v835, %v831
    %v1080 = vpack.c.b16 %v840, %v836
    %v1081 = vpack.c.b16 %v841, %v837
    %v1082 = vpack.c.b16 %v842, %v838
    %v1083 = vpack.c.b16 %v843, %v839
    %v1084 = vpack.c.b16 %v848, %v844
    %v1085 = vpack.c.b16 %v849, %v845
    %v1086 = vpack.c.b16 %v850, %v846
    %v1087 = vpack.c.b16 %v851, %v847
    %v1088 = vpack.c.b16 %v856, %v852
    %v1089 = vpack.c.b16 %v857, %v853
    %v1090 = vpack.c.b16 %v858, %v854
    %v1091 = vpack.c.b16 %v859, %v855
    %v1092 = vpack.c.b16 %v864, %v860
    %v1093 = vpack.c.b16 %v865, %v861
    %v1094 = vpack.c.b16 %v866, %v862
    %v1095 = vpack.c.b16 %v867, %v863
    %v1096 = vpack.c.b16 %v872, %v868
    %v1097 = vpack.c.b16 %v873, %v869
    %v1098 = vpack.c.b16 %v874, %v870
    %v1099 = vpack.c.b16 %v875, %v871
    %v1100 = vpack.c.b16 %v880, %v876
    %v1101 = vpack.c.b16 %v881, %v877
    %v1102 = vpack.c.b16 %v882, %v878
    %v1103 = vpack.c.b16 %v883, %v879
    %v1104 = vpack.c.b16 %v888, %v884
    %v1105 = vpack.c.b16 %v889, %v885
    %v1106 = vpack.c.b16 %v890, %v886
    %v1107 = vpack.c.b16 %v891, %v887
    %v1108 = vpack.c.b16 %v896, %v892
    %v1109 = vpack.c.b16 %v897, %v893
    %v1110 = vpack.c.b16 %v898, %v894
    %v1111 = vpack.c.b16 %v899, %v895
    %v1112 = vpack.c.b16 %v904, %v900
    %v1113 = vpack.c.b16 %v905, %v901
    %v1114 = vpack.c.b16 %v906, %v902
    %v1115 = vpack.c.b16 %v907, %v903
    %v1116 = vpack.c.b16 %v912, %v908
    %v1117 = vpack.c.b16 %v913, %v909
    %v1118 = vpack.c.b16 %v914, %v910
    %v1119 = vpack.c.b16 %v915, %v911
    %v1120 = vpack.c.b16 %v920, %v916
    %v1121 = vpack.c.b16 %v921, %v917
    %v1122 = vpack.c.b16 %v922, %v918
    %v1123 = vpack.c.b16 %v923, %v919
    %v1124 = vpack.c.b16 %v928, %v924
    %v1125 = vpack.c.b16 %v929, %v925
    %v1126 = vpack.c.b16 %v930, %v926
    %v1127 = vpack.c.b16 %v931, %v927
    %vm1324 = vcmask 130048
    %v1326 = vsel %vm1324, %v130, 0
    %v1329 = vsel %vm1324, %v137, 0
    %1331 = vmatpush.bf16.msra.mxu0 %v960
    %1332 = vmatpush.bf16.msra.mxu0 %v956
    %1333 = vmatpush.bf16.msra.mxu0 %v952
    %1334 = vmatpush.bf16.msra.mxu0 %v948
    %1335 = vmatpush.bf16.msra.mxu0 %v944
    %1336 = vmatpush.bf16.msra.mxu0 %v940
    %1337 = vmatpush.bf16.msra.mxu0 %v936
    %1338 = vmatpush.bf16.msra.mxu0 %v932
    %1339 = vmatmul.bf16.gmra.mxu0 %v124
    %v1340 = vpop.f32.mrf.mxu0
    %v1341 = vadd.f32 %v336, %v1340
    %v1342 = vpop.f32.mrf.mxu0
    %v1343 = vadd.f32 %v336, %v1342
    %1344 = vmatmul.bf16.gmra.mxu0 %v131
    %v1345 = vpop.f32.mrf.mxu0
    %v1346 = vadd.f32 %v336, %v1345
    %v1347 = vpop.f32.mrf.mxu0
    %v1348 = vadd.f32 %v336, %v1347
    %1349 = vdwg.mxu0
    %1350 = vmatpush.bf16.msra.mxu0 %v992
    %1351 = vmatpush.bf16.msra.mxu0 %v988
    %1352 = vmatpush.bf16.msra.mxu0 %v984
    %1353 = vmatpush.bf16.msra.mxu0 %v980
    %1354 = vmatpush.bf16.msra.mxu0 %v976
    %1355 = vmatpush.bf16.msra.mxu0 %v972
    %1356 = vmatpush.bf16.msra.mxu0 %v968
    %1357 = vmatpush.bf16.msra.mxu0 %v964
    %1358 = vmatmul.bf16.gmra.mxu0 %v125
    %v1359 = vpop.f32.mrf.mxu0
    %v1360 = vadd.f32 %v1341, %v1359
    %v1361 = vpop.f32.mrf.mxu0
    %v1362 = vadd.f32 %v1343, %v1361
    %1363 = vmatmul.bf16.gmra.mxu0 %v132
    %v1364 = vpop.f32.mrf.mxu0
    %v1365 = vadd.f32 %v1346, %v1364
    %v1366 = vpop.f32.mrf.mxu0
    %v1367 = vadd.f32 %v1348, %v1366
    %1368 = vdwg.mxu0
    %1369 = vmatpush.bf16.msra.mxu0 %v1024
    %1370 = vmatpush.bf16.msra.mxu0 %v1020
    %1371 = vmatpush.bf16.msra.mxu0 %v1016
    %1372 = vmatpush.bf16.msra.mxu0 %v1012
    %1373 = vmatpush.bf16.msra.mxu0 %v1008
    %1374 = vmatpush.bf16.msra.mxu0 %v1004
    %1375 = vmatpush.bf16.msra.mxu0 %v1000
    %1376 = vmatpush.bf16.msra.mxu0 %v996
    %1377 = vmatmul.bf16.gmra.mxu0 %v126
    %v1378 = vpop.f32.mrf.mxu0
    %v1379 = vadd.f32 %v1360, %v1378
    %v1380 = vpop.f32.mrf.mxu0
    %v1381 = vadd.f32 %v1362, %v1380
    %1382 = vmatmul.bf16.gmra.mxu0 %v133
    %v1383 = vpop.f32.mrf.mxu0
    %v1384 = vadd.f32 %v1365, %v1383
    %v1385 = vpop.f32.mrf.mxu0
    %v1386 = vadd.f32 %v1367, %v1385
    %1387 = vdwg.mxu0
    %1388 = vmatpush.bf16.msra.mxu0 %v1056
    %1389 = vmatpush.bf16.msra.mxu0 %v1052
    %1390 = vmatpush.bf16.msra.mxu0 %v1048
    %1391 = vmatpush.bf16.msra.mxu0 %v1044
    %1392 = vmatpush.bf16.msra.mxu0 %v1040
    %1393 = vmatpush.bf16.msra.mxu0 %v1036
    %1394 = vmatpush.bf16.msra.mxu0 %v1032
    %1395 = vmatpush.bf16.msra.mxu0 %v1028
    %1396 = vmatmul.bf16.gmra.mxu0 %v127
    %v1397 = vpop.f32.mrf.mxu0
    %v1398 = vadd.f32 %v1379, %v1397
    %v1399 = vpop.f32.mrf.mxu0
    %v1400 = vadd.f32 %v1381, %v1399
    %1401 = vmatmul.bf16.gmra.mxu0 %v134
    %v1402 = vpop.f32.mrf.mxu0
    %v1403 = vadd.f32 %v1384, %v1402
    %v1404 = vpop.f32.mrf.mxu0
    %v1405 = vadd.f32 %v1386, %v1404
    %1406 = vdwg.mxu0
    %1407 = vmatpush.bf16.msra.mxu0 %v1088
    %1408 = vmatpush.bf16.msra.mxu0 %v1084
    %1409 = vmatpush.bf16.msra.mxu0 %v1080
    %1410 = vmatpush.bf16.msra.mxu0 %v1076
    %1411 = vmatpush.bf16.msra.mxu0 %v1072
    %1412 = vmatpush.bf16.msra.mxu0 %v1068
    %1413 = vmatpush.bf16.msra.mxu0 %v1064
    %1414 = vmatpush.bf16.msra.mxu0 %v1060
    %1415 = vmatmul.bf16.gmra.mxu0 %v128
    %v1416 = vpop.f32.mrf.mxu0
    %v1417 = vadd.f32 %v1398, %v1416
    %v1418 = vpop.f32.mrf.mxu0
    %v1419 = vadd.f32 %v1400, %v1418
    %1420 = vmatmul.bf16.gmra.mxu0 %v135
    %v1421 = vpop.f32.mrf.mxu0
    %v1422 = vadd.f32 %v1403, %v1421
    %v1423 = vpop.f32.mrf.mxu0
    %v1424 = vadd.f32 %v1405, %v1423
    %1425 = vdwg.mxu0
    %1426 = vmatpush.bf16.msra.mxu0 %v1120
    %1427 = vmatpush.bf16.msra.mxu0 %v1116
    %1428 = vmatpush.bf16.msra.mxu0 %v1112
    %1429 = vmatpush.bf16.msra.mxu0 %v1108
    %1430 = vmatpush.bf16.msra.mxu0 %v1104
    %1431 = vmatpush.bf16.msra.mxu0 %v1100
    %1432 = vmatpush.bf16.msra.mxu0 %v1096
    %1433 = vmatpush.bf16.msra.mxu0 %v1092
    %1434 = vmatmul.bf16.gmra.mxu0 %v129
    %v1435 = vpop.f32.mrf.mxu0
    %v1436 = vadd.f32 %v1417, %v1435
    %v1437 = vpop.f32.mrf.mxu0
    %v1438 = vadd.f32 %v1419, %v1437
    %1439 = vmatmul.bf16.gmra.mxu0 %v136
    %v1440 = vpop.f32.mrf.mxu0
    %v1441 = vadd.f32 %v1422, %v1440
    %v1442 = vpop.f32.mrf.mxu0
    %v1443 = vadd.f32 %v1424, %v1442
    %1444 = vdwg.mxu0
    %1445 = vmatpush.bf16.msra.mxu0 0
    %1446 = vmatpush.bf16.msra.mxu0 0
    %1447 = vmatpush.bf16.msra.mxu0 0
    %1448 = vmatpush.bf16.msra.mxu0 0
    %1449 = vmatpush.bf16.msra.mxu0 0
    %1450 = vmatpush.bf16.msra.mxu0 0
    %1451 = vmatpush.bf16.msra.mxu0 0
    %1452 = vmatpush.bf16.msra.mxu0 %v1124
    %1453 = vmatmul.bf16.gmra.mxu0 %v1326
    %v1454 = vpop.f32.mrf.mxu0
    %v1455 = vadd.f32 %v1436, %v1454
    %v1456 = vpop.f32.mrf.mxu0
    %v1457 = vadd.f32 %v1438, %v1456
    %1458 = vmatmul.bf16.gmra.mxu0 %v1329
    %v1459 = vpop.f32.mrf.mxu0
    %v1460 = vadd.f32 %v1441, %v1459
    %v1461 = vpop.f32.mrf.mxu0
    %v1462 = vadd.f32 %v1443, %v1461
    %1463 = vdwg.mxu0
    %1464 = vmatpush.bf16.msra.mxu0 %v961
    %1465 = vmatpush.bf16.msra.mxu0 %v957
    %1466 = vmatpush.bf16.msra.mxu0 %v953
    %1467 = vmatpush.bf16.msra.mxu0 %v949
    %1468 = vmatpush.bf16.msra.mxu0 %v945
    %1469 = vmatpush.bf16.msra.mxu0 %v941
    %1470 = vmatpush.bf16.msra.mxu0 %v937
    %1471 = vmatpush.bf16.msra.mxu0 %v933
    %1472 = vmatmul.bf16.gmra.mxu0 %v124
    %v1473 = vpop.f32.mrf.mxu0
    %v1474 = vadd.f32 %v337, %v1473
    %v1475 = vpop.f32.mrf.mxu0
    %v1476 = vadd.f32 %v337, %v1475
    %1477 = vmatmul.bf16.gmra.mxu0 %v131
    %v1478 = vpop.f32.mrf.mxu0
    %v1479 = vadd.f32 %v337, %v1478
    %v1480 = vpop.f32.mrf.mxu0
    %v1481 = vadd.f32 %v337, %v1480
    %1482 = vdwg.mxu0
    %1483 = vmatpush.bf16.msra.mxu0 %v993
    %1484 = vmatpush.bf16.msra.mxu0 %v989
    %1485 = vmatpush.bf16.msra.mxu0 %v985
    %1486 = vmatpush.bf16.msra.mxu0 %v981
    %1487 = vmatpush.bf16.msra.mxu0 %v977
    %1488 = vmatpush.bf16.msra.mxu0 %v973
    %1489 = vmatpush.bf16.msra.mxu0 %v969
    %1490 = vmatpush.bf16.msra.mxu0 %v965
    %1491 = vmatmul.bf16.gmra.mxu0 %v125
    %v1492 = vpop.f32.mrf.mxu0
    %v1493 = vadd.f32 %v1474, %v1492
    %v1494 = vpop.f32.mrf.mxu0
    %v1495 = vadd.f32 %v1476, %v1494
    %1496 = vmatmul.bf16.gmra.mxu0 %v132
    %v1497 = vpop.f32.mrf.mxu0
    %v1498 = vadd.f32 %v1479, %v1497
    %v1499 = vpop.f32.mrf.mxu0
    %v1500 = vadd.f32 %v1481, %v1499
    %1501 = vdwg.mxu0
    %1502 = vmatpush.bf16.msra.mxu0 %v1025
    %1503 = vmatpush.bf16.msra.mxu0 %v1021
    %1504 = vmatpush.bf16.msra.mxu0 %v1017
    %1505 = vmatpush.bf16.msra.mxu0 %v1013
    %1506 = vmatpush.bf16.msra.mxu0 %v1009
    %1507 = vmatpush.bf16.msra.mxu0 %v1005
    %1508 = vmatpush.bf16.msra.mxu0 %v1001
    %1509 = vmatpush.bf16.msra.mxu0 %v997
    %1510 = vmatmul.bf16.gmra.mxu0 %v126
    %v1511 = vpop.f32.mrf.mxu0
    %v1512 = vadd.f32 %v1493, %v1511
    %v1513 = vpop.f32.mrf.mxu0
    %v1514 = vadd.f32 %v1495, %v1513
    %1515 = vmatmul.bf16.gmra.mxu0 %v133
    %v1516 = vpop.f32.mrf.mxu0
    %v1517 = vadd.f32 %v1498, %v1516
    %v1518 = vpop.f32.mrf.mxu0
    %v1519 = vadd.f32 %v1500, %v1518
    %1520 = vdwg.mxu0
    %1521 = vmatpush.bf16.msra.mxu0 %v1057
    %1522 = vmatpush.bf16.msra.mxu0 %v1053
    %1523 = vmatpush.bf16.msra.mxu0 %v1049
    %1524 = vmatpush.bf16.msra.mxu0 %v1045
    %1525 = vmatpush.bf16.msra.mxu0 %v1041
    %1526 = vmatpush.bf16.msra.mxu0 %v1037
    %1527 = vmatpush.bf16.msra.mxu0 %v1033
    %1528 = vmatpush.bf16.msra.mxu0 %v1029
    %1529 = vmatmul.bf16.gmra.mxu0 %v127
    %v1530 = vpop.f32.mrf.mxu0
    %v1531 = vadd.f32 %v1512, %v1530
    %v1532 = vpop.f32.mrf.mxu0
    %v1533 = vadd.f32 %v1514, %v1532
    %1534 = vmatmul.bf16.gmra.mxu0 %v134
    %v1535 = vpop.f32.mrf.mxu0
    %v1536 = vadd.f32 %v1517, %v1535
    %v1537 = vpop.f32.mrf.mxu0
    %v1538 = vadd.f32 %v1519, %v1537
    %1539 = vdwg.mxu0
    %1540 = vmatpush.bf16.msra.mxu0 %v1089
    %1541 = vmatpush.bf16.msra.mxu0 %v1085
    %1542 = vmatpush.bf16.msra.mxu0 %v1081
    %1543 = vmatpush.bf16.msra.mxu0 %v1077
    %1544 = vmatpush.bf16.msra.mxu0 %v1073
    %1545 = vmatpush.bf16.msra.mxu0 %v1069
    %1546 = vmatpush.bf16.msra.mxu0 %v1065
    %1547 = vmatpush.bf16.msra.mxu0 %v1061
    %1548 = vmatmul.bf16.gmra.mxu0 %v128
    %v1549 = vpop.f32.mrf.mxu0
    %v1550 = vadd.f32 %v1531, %v1549
    %v1551 = vpop.f32.mrf.mxu0
    %v1552 = vadd.f32 %v1533, %v1551
    %1553 = vmatmul.bf16.gmra.mxu0 %v135
    %v1554 = vpop.f32.mrf.mxu0
    %v1555 = vadd.f32 %v1536, %v1554
    %v1556 = vpop.f32.mrf.mxu0
    %v1557 = vadd.f32 %v1538, %v1556
    %1558 = vdwg.mxu0
    %1559 = vmatpush.bf16.msra.mxu0 %v1121
    %1560 = vmatpush.bf16.msra.mxu0 %v1117
    %1561 = vmatpush.bf16.msra.mxu0 %v1113
    %1562 = vmatpush.bf16.msra.mxu0 %v1109
    %1563 = vmatpush.bf16.msra.mxu0 %v1105
    %1564 = vmatpush.bf16.msra.mxu0 %v1101
    %1565 = vmatpush.bf16.msra.mxu0 %v1097
    %1566 = vmatpush.bf16.msra.mxu0 %v1093
    %1567 = vmatmul.bf16.gmra.mxu0 %v129
    %v1568 = vpop.f32.mrf.mxu0
    %v1569 = vadd.f32 %v1550, %v1568
    %v1570 = vpop.f32.mrf.mxu0
    %v1571 = vadd.f32 %v1552, %v1570
    %1572 = vmatmul.bf16.gmra.mxu0 %v136
    %v1573 = vpop.f32.mrf.mxu0
    %v1574 = vadd.f32 %v1555, %v1573
    %v1575 = vpop.f32.mrf.mxu0
    %v1576 = vadd.f32 %v1557, %v1575
    %1577 = vdwg.mxu0
    %1578 = vmatpush.bf16.msra.mxu0 0
    %1579 = vmatpush.bf16.msra.mxu0 0
    %1580 = vmatpush.bf16.msra.mxu0 0
    %1581 = vmatpush.bf16.msra.mxu0 0
    %1582 = vmatpush.bf16.msra.mxu0 0
    %1583 = vmatpush.bf16.msra.mxu0 0
    %1584 = vmatpush.bf16.msra.mxu0 0
    %1585 = vmatpush.bf16.msra.mxu0 %v1125
    %1586 = vmatmul.bf16.gmra.mxu0 %v1326
    %v1587 = vpop.f32.mrf.mxu0
    %v1588 = vadd.f32 %v1569, %v1587
    %v1589 = vpop.f32.mrf.mxu0
    %v1590 = vadd.f32 %v1571, %v1589
    %1591 = vmatmul.bf16.gmra.mxu0 %v1329
    %v1592 = vpop.f32.mrf.mxu0
    %v1593 = vadd.f32 %v1574, %v1592
    %v1594 = vpop.f32.mrf.mxu0
    %v1595 = vadd.f32 %v1576, %v1594
    %1596 = vdwg.mxu0
    %1597 = vmatpush.bf16.msra.mxu0 %v962
    %1598 = vmatpush.bf16.msra.mxu0 %v958
    %1599 = vmatpush.bf16.msra.mxu0 %v954
    %1600 = vmatpush.bf16.msra.mxu0 %v950
    %1601 = vmatpush.bf16.msra.mxu0 %v946
    %1602 = vmatpush.bf16.msra.mxu0 %v942
    %1603 = vmatpush.bf16.msra.mxu0 %v938
    %1604 = vmatpush.bf16.msra.mxu0 %v934
    %1605 = vmatmul.bf16.gmra.mxu0 %v124
    %v1606 = vpop.f32.mrf.mxu0
    %v1607 = vadd.f32 %v338, %v1606
    %v1608 = vpop.f32.mrf.mxu0
    %v1609 = vadd.f32 %v338, %v1608
    %1610 = vmatmul.bf16.gmra.mxu0 %v131
    %v1611 = vpop.f32.mrf.mxu0
    %v1612 = vadd.f32 %v338, %v1611
    %v1613 = vpop.f32.mrf.mxu0
    %v1614 = vadd.f32 %v338, %v1613
    %1615 = vdwg.mxu0
    %1616 = vmatpush.bf16.msra.mxu0 %v994
    %1617 = vmatpush.bf16.msra.mxu0 %v990
    %1618 = vmatpush.bf16.msra.mxu0 %v986
    %1619 = vmatpush.bf16.msra.mxu0 %v982
    %1620 = vmatpush.bf16.msra.mxu0 %v978
    %1621 = vmatpush.bf16.msra.mxu0 %v974
    %1622 = vmatpush.bf16.msra.mxu0 %v970
    %1623 = vmatpush.bf16.msra.mxu0 %v966
    %1624 = vmatmul.bf16.gmra.mxu0 %v125
    %v1625 = vpop.f32.mrf.mxu0
    %v1626 = vadd.f32 %v1607, %v1625
    %v1627 = vpop.f32.mrf.mxu0
    %v1628 = vadd.f32 %v1609, %v1627
    %1629 = vmatmul.bf16.gmra.mxu0 %v132
    %v1630 = vpop.f32.mrf.mxu0
    %v1631 = vadd.f32 %v1612, %v1630
    %v1632 = vpop.f32.mrf.mxu0
    %v1633 = vadd.f32 %v1614, %v1632
    %1634 = vdwg.mxu0
    %1635 = vmatpush.bf16.msra.mxu0 %v1026
    %1636 = vmatpush.bf16.msra.mxu0 %v1022
    %1637 = vmatpush.bf16.msra.mxu0 %v1018
    %1638 = vmatpush.bf16.msra.mxu0 %v1014
    %1639 = vmatpush.bf16.msra.mxu0 %v1010
    %1640 = vmatpush.bf16.msra.mxu0 %v1006
    %1641 = vmatpush.bf16.msra.mxu0 %v1002
    %1642 = vmatpush.bf16.msra.mxu0 %v998
    %1643 = vmatmul.bf16.gmra.mxu0 %v126
    %v1644 = vpop.f32.mrf.mxu0
    %v1645 = vadd.f32 %v1626, %v1644
    %v1646 = vpop.f32.mrf.mxu0
    %v1647 = vadd.f32 %v1628, %v1646
    %1648 = vmatmul.bf16.gmra.mxu0 %v133
    %v1649 = vpop.f32.mrf.mxu0
    %v1650 = vadd.f32 %v1631, %v1649
    %v1651 = vpop.f32.mrf.mxu0
    %v1652 = vadd.f32 %v1633, %v1651
    %1653 = vdwg.mxu0
    %1654 = vmatpush.bf16.msra.mxu0 %v1058
    %1655 = vmatpush.bf16.msra.mxu0 %v1054
    %1656 = vmatpush.bf16.msra.mxu0 %v1050
    %1657 = vmatpush.bf16.msra.mxu0 %v1046
    %1658 = vmatpush.bf16.msra.mxu0 %v1042
    %1659 = vmatpush.bf16.msra.mxu0 %v1038
    %1660 = vmatpush.bf16.msra.mxu0 %v1034
    %1661 = vmatpush.bf16.msra.mxu0 %v1030
    %1662 = vmatmul.bf16.gmra.mxu0 %v127
    %v1663 = vpop.f32.mrf.mxu0
    %v1664 = vadd.f32 %v1645, %v1663
    %v1665 = vpop.f32.mrf.mxu0
    %v1666 = vadd.f32 %v1647, %v1665
    %1667 = vmatmul.bf16.gmra.mxu0 %v134
    %v1668 = vpop.f32.mrf.mxu0
    %v1669 = vadd.f32 %v1650, %v1668
    %v1670 = vpop.f32.mrf.mxu0
    %v1671 = vadd.f32 %v1652, %v1670
    %1672 = vdwg.mxu0
    %1673 = vmatpush.bf16.msra.mxu0 %v1090
    %1674 = vmatpush.bf16.msra.mxu0 %v1086
    %1675 = vmatpush.bf16.msra.mxu0 %v1082
    %1676 = vmatpush.bf16.msra.mxu0 %v1078
    %1677 = vmatpush.bf16.msra.mxu0 %v1074
    %1678 = vmatpush.bf16.msra.mxu0 %v1070
    %1679 = vmatpush.bf16.msra.mxu0 %v1066
    %1680 = vmatpush.bf16.msra.mxu0 %v1062
    %1681 = vmatmul.bf16.gmra.mxu0 %v128
    %v1682 = vpop.f32.mrf.mxu0
    %v1683 = vadd.f32 %v1664, %v1682
    %v1684 = vpop.f32.mrf.mxu0
    %v1685 = vadd.f32 %v1666, %v1684
    %1686 = vmatmul.bf16.gmra.mxu0 %v135
    %v1687 = vpop.f32.mrf.mxu0
    %v1688 = vadd.f32 %v1669, %v1687
    %v1689 = vpop.f32.mrf.mxu0
    %v1690 = vadd.f32 %v1671, %v1689
    %1691 = vdwg.mxu0
    %1692 = vmatpush.bf16.msra.mxu0 %v1122
    %1693 = vmatpush.bf16.msra.mxu0 %v1118
    %1694 = vmatpush.bf16.msra.mxu0 %v1114
    %1695 = vmatpush.bf16.msra.mxu0 %v1110
    %1696 = vmatpush.bf16.msra.mxu0 %v1106
    %1697 = vmatpush.bf16.msra.mxu0 %v1102
    %1698 = vmatpush.bf16.msra.mxu0 %v1098
    %1699 = vmatpush.bf16.msra.mxu0 %v1094
    %1700 = vmatmul.bf16.gmra.mxu0 %v129
    %v1701 = vpop.f32.mrf.mxu0
    %v1702 = vadd.f32 %v1683, %v1701
    %v1703 = vpop.f32.mrf.mxu0
    %v1704 = vadd.f32 %v1685, %v1703
    %1705 = vmatmul.bf16.gmra.mxu0 %v136
    %v1706 = vpop.f32.mrf.mxu0
    %v1707 = vadd.f32 %v1688, %v1706
    %v1708 = vpop.f32.mrf.mxu0
    %v1709 = vadd.f32 %v1690, %v1708
    %1710 = vdwg.mxu0
    %1711 = vmatpush.bf16.msra.mxu0 0
    %1712 = vmatpush.bf16.msra.mxu0 0
    %1713 = vmatpush.bf16.msra.mxu0 0
    %1714 = vmatpush.bf16.msra.mxu0 0
    %1715 = vmatpush.bf16.msra.mxu0 0
    %1716 = vmatpush.bf16.msra.mxu0 0
    %1717 = vmatpush.bf16.msra.mxu0 0
    %1718 = vmatpush.bf16.msra.mxu0 %v1126
    %1719 = vmatmul.bf16.gmra.mxu0 %v1326
    %v1720 = vpop.f32.mrf.mxu0
    %v1721 = vadd.f32 %v1702, %v1720
    %v1722 = vpop.f32.mrf.mxu0
    %v1723 = vadd.f32 %v1704, %v1722
    %1724 = vmatmul.bf16.gmra.mxu0 %v1329
    %v1725 = vpop.f32.mrf.mxu0
    %v1726 = vadd.f32 %v1707, %v1725
    %v1727 = vpop.f32.mrf.mxu0
    %v1728 = vadd.f32 %v1709, %v1727
    %1729 = vdwg.mxu0
    %1730 = vmatpush.bf16.msra.mxu0 %v963
    %1731 = vmatpush.bf16.msra.mxu0 %v959
    %1732 = vmatpush.bf16.msra.mxu0 %v955
    %1733 = vmatpush.bf16.msra.mxu0 %v951
    %1734 = vmatpush.bf16.msra.mxu0 %v947
    %1735 = vmatpush.bf16.msra.mxu0 %v943
    %1736 = vmatpush.bf16.msra.mxu0 %v939
    %1737 = vmatpush.bf16.msra.mxu0 %v935
    %1738 = vmatmul.bf16.gmra.mxu0 %v124
    %v1739 = vpop.f32.mrf.mxu0
    %v1740 = vadd.f32 %v339, %v1739
    %v1741 = vpop.f32.mrf.mxu0
    %v1742 = vadd.f32 %v339, %v1741
    %1743 = vmatmul.bf16.gmra.mxu0 %v131
    %v1744 = vpop.f32.mrf.mxu0
    %v1745 = vadd.f32 %v339, %v1744
    %v1746 = vpop.f32.mrf.mxu0
    %v1747 = vadd.f32 %v339, %v1746
    %1748 = vdwg.mxu0
    %1749 = vmatpush.bf16.msra.mxu0 %v995
    %1750 = vmatpush.bf16.msra.mxu0 %v991
    %1751 = vmatpush.bf16.msra.mxu0 %v987
    %1752 = vmatpush.bf16.msra.mxu0 %v983
    %1753 = vmatpush.bf16.msra.mxu0 %v979
    %1754 = vmatpush.bf16.msra.mxu0 %v975
    %1755 = vmatpush.bf16.msra.mxu0 %v971
    %1756 = vmatpush.bf16.msra.mxu0 %v967
    %1757 = vmatmul.bf16.gmra.mxu0 %v125
    %v1758 = vpop.f32.mrf.mxu0
    %v1759 = vadd.f32 %v1740, %v1758
    %v1760 = vpop.f32.mrf.mxu0
    %v1761 = vadd.f32 %v1742, %v1760
    %1762 = vmatmul.bf16.gmra.mxu0 %v132
    %v1763 = vpop.f32.mrf.mxu0
    %v1764 = vadd.f32 %v1745, %v1763
    %v1765 = vpop.f32.mrf.mxu0
    %v1766 = vadd.f32 %v1747, %v1765
    %1767 = vdwg.mxu0
    %1768 = vmatpush.bf16.msra.mxu0 %v1027
    %1769 = vmatpush.bf16.msra.mxu0 %v1023
    %1770 = vmatpush.bf16.msra.mxu0 %v1019
    %1771 = vmatpush.bf16.msra.mxu0 %v1015
    %1772 = vmatpush.bf16.msra.mxu0 %v1011
    %1773 = vmatpush.bf16.msra.mxu0 %v1007
    %1774 = vmatpush.bf16.msra.mxu0 %v1003
    %1775 = vmatpush.bf16.msra.mxu0 %v999
    %1776 = vmatmul.bf16.gmra.mxu0 %v126
    %v1777 = vpop.f32.mrf.mxu0
    %v1778 = vadd.f32 %v1759, %v1777
    %v1779 = vpop.f32.mrf.mxu0
    %v1780 = vadd.f32 %v1761, %v1779
    %1781 = vmatmul.bf16.gmra.mxu0 %v133
    %v1782 = vpop.f32.mrf.mxu0
    %v1783 = vadd.f32 %v1764, %v1782
    %v1784 = vpop.f32.mrf.mxu0
    %v1785 = vadd.f32 %v1766, %v1784
    %1786 = vdwg.mxu0
    %1787 = vmatpush.bf16.msra.mxu0 %v1059
    %1788 = vmatpush.bf16.msra.mxu0 %v1055
    %1789 = vmatpush.bf16.msra.mxu0 %v1051
    %1790 = vmatpush.bf16.msra.mxu0 %v1047
    %1791 = vmatpush.bf16.msra.mxu0 %v1043
    %1792 = vmatpush.bf16.msra.mxu0 %v1039
    %1793 = vmatpush.bf16.msra.mxu0 %v1035
    %1794 = vmatpush.bf16.msra.mxu0 %v1031
    %1795 = vmatmul.bf16.gmra.mxu0 %v127
    %v1796 = vpop.f32.mrf.mxu0
    %v1797 = vadd.f32 %v1778, %v1796
    %v1798 = vpop.f32.mrf.mxu0
    %v1799 = vadd.f32 %v1780, %v1798
    %1800 = vmatmul.bf16.gmra.mxu0 %v134
    %v1801 = vpop.f32.mrf.mxu0
    %v1802 = vadd.f32 %v1783, %v1801
    %v1803 = vpop.f32.mrf.mxu0
    %v1804 = vadd.f32 %v1785, %v1803
    %1805 = vdwg.mxu0
    %1806 = vmatpush.bf16.msra.mxu0 %v1091
    %1807 = vmatpush.bf16.msra.mxu0 %v1087
    %1808 = vmatpush.bf16.msra.mxu0 %v1083
    %1809 = vmatpush.bf16.msra.mxu0 %v1079
    %1810 = vmatpush.bf16.msra.mxu0 %v1075
    %1811 = vmatpush.bf16.msra.mxu0 %v1071
    %1812 = vmatpush.bf16.msra.mxu0 %v1067
    %1813 = vmatpush.bf16.msra.mxu0 %v1063
    %1814 = vmatmul.bf16.gmra.mxu0 %v128
    %v1815 = vpop.f32.mrf.mxu0
    %v1816 = vadd.f32 %v1797, %v1815
    %v1817 = vpop.f32.mrf.mxu0
    %v1818 = vadd.f32 %v1799, %v1817
    %1819 = vmatmul.bf16.gmra.mxu0 %v135
    %v1820 = vpop.f32.mrf.mxu0
    %v1821 = vadd.f32 %v1802, %v1820
    %v1822 = vpop.f32.mrf.mxu0
    %v1823 = vadd.f32 %v1804, %v1822
    %1824 = vdwg.mxu0
    %1825 = vmatpush.bf16.msra.mxu0 %v1123
    %1826 = vmatpush.bf16.msra.mxu0 %v1119
    %1827 = vmatpush.bf16.msra.mxu0 %v1115
    %1828 = vmatpush.bf16.msra.mxu0 %v1111
    %1829 = vmatpush.bf16.msra.mxu0 %v1107
    %1830 = vmatpush.bf16.msra.mxu0 %v1103
    %1831 = vmatpush.bf16.msra.mxu0 %v1099
    %1832 = vmatpush.bf16.msra.mxu0 %v1095
    %1833 = vmatmul.bf16.gmra.mxu0 %v129
    %v1834 = vpop.f32.mrf.mxu0
    %v1835 = vadd.f32 %v1816, %v1834
    %v1836 = vpop.f32.mrf.mxu0
    %v1837 = vadd.f32 %v1818, %v1836
    %1838 = vmatmul.bf16.gmra.mxu0 %v136
    %v1839 = vpop.f32.mrf.mxu0
    %v1840 = vadd.f32 %v1821, %v1839
    %v1841 = vpop.f32.mrf.mxu0
    %v1842 = vadd.f32 %v1823, %v1841
    %1843 = vdwg.mxu0
    %1844 = vmatpush.bf16.msra.mxu0 0
    %1845 = vmatpush.bf16.msra.mxu0 0
    %1846 = vmatpush.bf16.msra.mxu0 0
    %1847 = vmatpush.bf16.msra.mxu0 0
    %1848 = vmatpush.bf16.msra.mxu0 0
    %1849 = vmatpush.bf16.msra.mxu0 0
    %1850 = vmatpush.bf16.msra.mxu0 0
    %1851 = vmatpush.bf16.msra.mxu0 %v1127
    %1852 = vmatmul.bf16.gmra.mxu0 %v1326
    %v1853 = vpop.f32.mrf.mxu0
    %v1854 = vadd.f32 %v1835, %v1853
    %v1855 = vpop.f32.mrf.mxu0
    %v1856 = vadd.f32 %v1837, %v1855
    %1857 = vmatmul.bf16.gmra.mxu0 %v1329
    %v1858 = vpop.f32.mrf.mxu0
    %v1859 = vadd.f32 %v1840, %v1858
    %v1860 = vpop.f32.mrf.mxu0
    %v1861 = vadd.f32 %v1842, %v1860
    %1862 = vdwg.mxu0
    %v1863 = vmax.f32 %v1455, 0.0
    %v1864 = vmax.f32 %v1588, 0.0
    %v1865 = vmax.f32 %v1721, 0.0
    %v1866 = vmax.f32 %v1854, 0.0
    %v1867 = vmax.f32 %v1457, 0.0
    %v1868 = vmax.f32 %v1590, 0.0
    %v1869 = vmax.f32 %v1723, 0.0
    %v1870 = vmax.f32 %v1856, 0.0
    %v1871 = vmax.f32 %v1460, 0.0
    %v1872 = vmax.f32 %v1593, 0.0
    %v1873 = vmax.f32 %v1726, 0.0
    %v1874 = vmax.f32 %v1859, 0.0
    %v1875 = vmax.f32 %v1462, 0.0
    %v1876 = vmax.f32 %v1595, 0.0
    %v1877 = vmax.f32 %v1728, 0.0
    %v1878 = vmax.f32 %v1861, 0.0
    %v1879 = vpack.c.bf16 %v1867, %v1863
    %v1880 = vpack.c.bf16 %v1868, %v1864
    %v1881 = vpack.c.bf16 %v1869, %v1865
    %v1882 = vpack.c.bf16 %v1870, %v1866
    %v1883 = vpack.c.bf16 %v1875, %v1871
    %v1884 = vpack.c.bf16 %v1876, %v1872
    %v1885 = vpack.c.bf16 %v1877, %v1873
    %v1886 = vpack.c.bf16 %v1878, %v1874
    %v1887 = vld [vmem:[#allocation6] sm:$0xff]
    %v1888 = vld [vmem:[#allocation6 + $0x8] sm:$0xff]
    %v1889 = vld [vmem:[#allocation6 + $0x10] sm:$0xff]
    %v1890 = vld [vmem:[#allocation6 + $0x18] sm:$0xff]
    %v1891 = vld [vmem:[#allocation6 + $0x20] sm:$0xff]
    %v1892 = vld [vmem:[#allocation6 + $0x28] sm:$0xff]
    %v1893 = vld [vmem:[#allocation6 + $0x30] sm:$0xff]
    %v1894 = vld [vmem:[#allocation6 + $0x38] sm:$0xff]
    %v1895 = vld [vmem:[#allocation6 + $0x40] sm:$0xff]
    %v1896 = vld [vmem:[#allocation6 + $0x48] sm:$0xff]
    %v1897 = vld [vmem:[#allocation6 + $0x50] sm:$0xff]
    %v1898 = vld [vmem:[#allocation6 + $0x58] sm:$0xff]
    %v1899 = vld [vmem:[#allocation6 + $0x60] sm:$0xff]
    %v1900 = vld [vmem:[#allocation6 + $0x68] sm:$0xff]
    %v1901 = vld [vmem:[#allocation6 + $0x70] sm:$0xff]
    %v1902 = vld [vmem:[#allocation6 + $0x78] sm:$0xff]
    %v1903 = vld [vmem:[#allocation6 + $0x80] sm:$0xff]
    %v1904 = vld [vmem:[#allocation6 + $0x88] sm:$0xff]
    %v1905 = vld [vmem:[#allocation6 + $0x90] sm:$0xff]
    %v1906 = vld [vmem:[#allocation6 + $0x98] sm:$0xff]
    %v1907 = vld [vmem:[#allocation6 + $0xa0] sm:$0xff]
    %v1908 = vld [vmem:[#allocation6 + $0xa8] sm:$0xff]
    %v1909 = vld [vmem:[#allocation6 + $0xb0] sm:$0xff]
    %v1910 = vld [vmem:[#allocation6 + $0xb8] sm:$0xff]
    %v1911 = vld [vmem:[#allocation6 + $0xc0] sm:$0xff]
    %v1912 = vld [vmem:[#allocation6 + $0xc8] sm:$0xff]
    %v1913 = vld [vmem:[#allocation6 + $0xd0] sm:$0xff]
    %v1914 = vld [vmem:[#allocation6 + $0xd8] sm:$0xff]
    %v1915 = vld [vmem:[#allocation6 + $0xe0] sm:$0xff]
    %v1916 = vld [vmem:[#allocation6 + $0xe8] sm:$0xff]
    %v1917 = vld [vmem:[#allocation6 + $0xf0] sm:$0xff]
    %v1918 = vld [vmem:[#allocation6 + $0xf8] sm:$0xff]
    %v1919 = vld [vmem:[#allocation6 + $0x100] sm:$0xff]
    %v1920 = vld [vmem:[#allocation6 + $0x108] sm:$0xff]
    %v1921 = vld [vmem:[#allocation6 + $0x110] sm:$0xff]
    %v1922 = vld [vmem:[#allocation6 + $0x118] sm:$0xff]
    %v1923 = vld [vmem:[#allocation6 + $0x120] sm:$0xff]
    %v1924 = vld [vmem:[#allocation6 + $0x128] sm:$0xff]
    %v1925 = vld [vmem:[#allocation6 + $0x130] sm:$0xff]
    %v1926 = vld [vmem:[#allocation6 + $0x138] sm:$0xff]
    %v1927 = vld [vmem:[#allocation6 + $0x140] sm:$0xff]
    %v1928 = vld [vmem:[#allocation6 + $0x148] sm:$0xff]
    %v1929 = vld [vmem:[#allocation6 + $0x150] sm:$0xff]
    %v1930 = vld [vmem:[#allocation6 + $0x158] sm:$0xff]
    %v1931 = vld [vmem:[#allocation6 + $0x160] sm:$0xff]
    %v1932 = vld [vmem:[#allocation6 + $0x168] sm:$0xff]
    %v1933 = vld [vmem:[#allocation6 + $0x170] sm:$0xff]
    %v1934 = vld [vmem:[#allocation6 + $0x178] sm:$0xff]
    %v1935 = vld [vmem:[#allocation6 + $0x180] sm:$0xff]
    %v1936 = vld [vmem:[#allocation6 + $0x188] sm:$0xff]
    %v1937 = vld [vmem:[#allocation6 + $0x190] sm:$0xff]
    %v1938 = vld [vmem:[#allocation6 + $0x198] sm:$0xff]
    %v1939 = vld [vmem:[#allocation6 + $0x1a0] sm:$0xff]
    %v1940 = vld [vmem:[#allocation6 + $0x1a8] sm:$0xff]
    %v1941 = vld [vmem:[#allocation6 + $0x1b0] sm:$0xff]
    %v1942 = vld [vmem:[#allocation6 + $0x1b8] sm:$0xff]
    %v1943 = vld [vmem:[#allocation6 + $0x1c0] sm:$0xff]
    %v1944 = vld [vmem:[#allocation6 + $0x1c8] sm:$0xff]
    %v1945 = vld [vmem:[#allocation6 + $0x1d0] sm:$0xff]
    %v1946 = vld [vmem:[#allocation6 + $0x1d8] sm:$0xff]
    %v1947 = vld [vmem:[#allocation6 + $0x1e0] sm:$0xff]
    %v1948 = vld [vmem:[#allocation6 + $0x1e8] sm:$0xff]
    %v1949 = vld [vmem:[#allocation6 + $0x1f0] sm:$0xff]
    %v1950 = vld [vmem:[#allocation6 + $0x1f8] sm:$0xff]
    %v1951 = vld [vmem:[%s4] sm:$0x3]
    %v1953 = vperm.slane %v1951, 0
    %v1954 = vperm.slane %v1951, 1
    %v2021 = vunpack.c.l.b16 %v1887
    %v2022 = vunpack.c.h.b16 %v1887
    %v2023 = vunpack.c.l.b16 %v1888
    %v2024 = vunpack.c.h.b16 %v1888
    %v2025 = vunpack.c.l.b16 %v1889
    %v2026 = vunpack.c.h.b16 %v1889
    %v2027 = vunpack.c.l.b16 %v1890
    %v2028 = vunpack.c.h.b16 %v1890
    %v2029 = vunpack.c.l.b16 %v1891
    %v2030 = vunpack.c.h.b16 %v1891
    %v2031 = vunpack.c.l.b16 %v1892
    %v2032 = vunpack.c.h.b16 %v1892
    %v2033 = vunpack.c.l.b16 %v1893
    %v2034 = vunpack.c.h.b16 %v1893
    %v2035 = vunpack.c.l.b16 %v1894
    %v2036 = vunpack.c.h.b16 %v1894
    %v2037 = vunpack.c.l.b16 %v1895
    %v2038 = vunpack.c.h.b16 %v1895
    %v2039 = vunpack.c.l.b16 %v1896
    %v2040 = vunpack.c.h.b16 %v1896
    %v2041 = vunpack.c.l.b16 %v1897
    %v2042 = vunpack.c.h.b16 %v1897
    %v2043 = vunpack.c.l.b16 %v1898
    %v2044 = vunpack.c.h.b16 %v1898
    %v2045 = vunpack.c.l.b16 %v1899
    %v2046 = vunpack.c.h.b16 %v1899
    %v2047 = vunpack.c.l.b16 %v1900
    %v2048 = vunpack.c.h.b16 %v1900
    %v2049 = vunpack.c.l.b16 %v1901
    %v2050 = vunpack.c.h.b16 %v1901
    %v2051 = vunpack.c.l.b16 %v1902
    %v2052 = vunpack.c.h.b16 %v1902
    %v2053 = vunpack.c.l.b16 %v1903
    %v2054 = vunpack.c.h.b16 %v1903
    %v2055 = vunpack.c.l.b16 %v1904
    %v2056 = vunpack.c.h.b16 %v1904
    %v2057 = vunpack.c.l.b16 %v1905
    %v2058 = vunpack.c.h.b16 %v1905
    %v2059 = vunpack.c.l.b16 %v1906
    %v2060 = vunpack.c.h.b16 %v1906
    %v2061 = vunpack.c.l.b16 %v1907
    %v2062 = vunpack.c.h.b16 %v1907
    %v2063 = vunpack.c.l.b16 %v1908
    %v2064 = vunpack.c.h.b16 %v1908
    %v2065 = vunpack.c.l.b16 %v1909
    %v2066 = vunpack.c.h.b16 %v1909
    %v2067 = vunpack.c.l.b16 %v1910
    %v2068 = vunpack.c.h.b16 %v1910
    %v2069 = vunpack.c.l.b16 %v1911
    %v2070 = vunpack.c.h.b16 %v1911
    %v2071 = vunpack.c.l.b16 %v1912
    %v2072 = vunpack.c.h.b16 %v1912
    %v2073 = vunpack.c.l.b16 %v1913
    %v2074 = vunpack.c.h.b16 %v1913
    %v2075 = vunpack.c.l.b16 %v1914
    %v2076 = vunpack.c.h.b16 %v1914
    %v2077 = vunpack.c.l.b16 %v1915
    %v2078 = vunpack.c.h.b16 %v1915
    %v2079 = vunpack.c.l.b16 %v1916
    %v2080 = vunpack.c.h.b16 %v1916
    %v2081 = vunpack.c.l.b16 %v1917
    %v2082 = vunpack.c.h.b16 %v1917
    %v2083 = vunpack.c.l.b16 %v1918
    %v2084 = vunpack.c.h.b16 %v1918
    %v2085 = vunpack.c.l.b16 %v1919
    %v2086 = vunpack.c.h.b16 %v1919
    %v2087 = vunpack.c.l.b16 %v1920
    %v2088 = vunpack.c.h.b16 %v1920
    %v2089 = vunpack.c.l.b16 %v1921
    %v2090 = vunpack.c.h.b16 %v1921
    %v2091 = vunpack.c.l.b16 %v1922
    %v2092 = vunpack.c.h.b16 %v1922
    %v2093 = vunpack.c.l.b16 %v1923
    %v2094 = vunpack.c.h.b16 %v1923
    %v2095 = vunpack.c.l.b16 %v1924
    %v2096 = vunpack.c.h.b16 %v1924
    %v2097 = vunpack.c.l.b16 %v1925
    %v2098 = vunpack.c.h.b16 %v1925
    %v2099 = vunpack.c.l.b16 %v1926
    %v2100 = vunpack.c.h.b16 %v1926
    %v2101 = vunpack.c.l.b16 %v1927
    %v2102 = vunpack.c.h.b16 %v1927
    %v2103 = vunpack.c.l.b16 %v1928
    %v2104 = vunpack.c.h.b16 %v1928
    %v2105 = vunpack.c.l.b16 %v1929
    %v2106 = vunpack.c.h.b16 %v1929
    %v2107 = vunpack.c.l.b16 %v1930
    %v2108 = vunpack.c.h.b16 %v1930
    %v2109 = vunpack.c.l.b16 %v1931
    %v2110 = vunpack.c.h.b16 %v1931
    %v2111 = vunpack.c.l.b16 %v1932
    %v2112 = vunpack.c.h.b16 %v1932
    %v2113 = vunpack.c.l.b16 %v1933
    %v2114 = vunpack.c.h.b16 %v1933
    %v2115 = vunpack.c.l.b16 %v1934
    %v2116 = vunpack.c.h.b16 %v1934
    %v2117 = vunpack.c.l.b16 %v1935
    %v2118 = vunpack.c.h.b16 %v1935
    %v2119 = vunpack.c.l.b16 %v1936
    %v2120 = vunpack.c.h.b16 %v1936
    %v2121 = vunpack.c.l.b16 %v1937
    %v2122 = vunpack.c.h.b16 %v1937
    %v2123 = vunpack.c.l.b16 %v1938
    %v2124 = vunpack.c.h.b16 %v1938
    %v2125 = vunpack.c.l.b16 %v1939
    %v2126 = vunpack.c.h.b16 %v1939
    %v2127 = vunpack.c.l.b16 %v1940
    %v2128 = vunpack.c.h.b16 %v1940
    %v2129 = vunpack.c.l.b16 %v1941
    %v2130 = vunpack.c.h.b16 %v1941
    %v2131 = vunpack.c.l.b16 %v1942
    %v2132 = vunpack.c.h.b16 %v1942
    %v2133 = vunpack.c.l.b16 %v1943
    %v2134 = vunpack.c.h.b16 %v1943
    %v2135 = vunpack.c.l.b16 %v1944
    %v2136 = vunpack.c.h.b16 %v1944
    %v2137 = vunpack.c.l.b16 %v1945
    %v2138 = vunpack.c.h.b16 %v1945
    %v2139 = vunpack.c.l.b16 %v1946
    %v2140 = vunpack.c.h.b16 %v1946
    %v2141 = vunpack.c.l.b16 %v1947
    %v2142 = vunpack.c.h.b16 %v1947
    %v2143 = vunpack.c.l.b16 %v1948
    %v2144 = vunpack.c.h.b16 %v1948
    %v2145 = vunpack.c.l.b16 %v1949
    %v2146 = vunpack.c.h.b16 %v1949
    %v2147 = vunpack.c.l.b16 %v1950
    %v2148 = vunpack.c.h.b16 %v1950
    %v2149 = vpack.c.b16 %v2023, %v2021
    %v2150 = vpack.c.b16 %v2024, %v2022
    %v2151 = vpack.c.b16 %v2027, %v2025
    %v2152 = vpack.c.b16 %v2028, %v2026
    %v2153 = vpack.c.b16 %v2031, %v2029
    %v2154 = vpack.c.b16 %v2032, %v2030
    %v2155 = vpack.c.b16 %v2035, %v2033
    %v2156 = vpack.c.b16 %v2036, %v2034
    %v2157 = vpack.c.b16 %v2039, %v2037
    %v2158 = vpack.c.b16 %v2040, %v2038
    %v2159 = vpack.c.b16 %v2043, %v2041
    %v2160 = vpack.c.b16 %v2044, %v2042
    %v2161 = vpack.c.b16 %v2047, %v2045
    %v2162 = vpack.c.b16 %v2048, %v2046
    %v2163 = vpack.c.b16 %v2051, %v2049
    %v2164 = vpack.c.b16 %v2052, %v2050
    %v2165 = vpack.c.b16 %v2055, %v2053
    %v2166 = vpack.c.b16 %v2056, %v2054
    %v2167 = vpack.c.b16 %v2059, %v2057
    %v2168 = vpack.c.b16 %v2060, %v2058
    %v2169 = vpack.c.b16 %v2063, %v2061
    %v2170 = vpack.c.b16 %v2064, %v2062
    %v2171 = vpack.c.b16 %v2067, %v2065
    %v2172 = vpack.c.b16 %v2068, %v2066
    %v2173 = vpack.c.b16 %v2071, %v2069
    %v2174 = vpack.c.b16 %v2072, %v2070
    %v2175 = vpack.c.b16 %v2075, %v2073
    %v2176 = vpack.c.b16 %v2076, %v2074
    %v2177 = vpack.c.b16 %v2079, %v2077
    %v2178 = vpack.c.b16 %v2080, %v2078
    %v2179 = vpack.c.b16 %v2083, %v2081
    %v2180 = vpack.c.b16 %v2084, %v2082
    %v2181 = vpack.c.b16 %v2087, %v2085
    %v2182 = vpack.c.b16 %v2088, %v2086
    %v2183 = vpack.c.b16 %v2091, %v2089
    %v2184 = vpack.c.b16 %v2092, %v2090
    %v2185 = vpack.c.b16 %v2095, %v2093
    %v2186 = vpack.c.b16 %v2096, %v2094
    %v2187 = vpack.c.b16 %v2099, %v2097
    %v2188 = vpack.c.b16 %v2100, %v2098
    %v2189 = vpack.c.b16 %v2103, %v2101
    %v2190 = vpack.c.b16 %v2104, %v2102
    %v2191 = vpack.c.b16 %v2107, %v2105
    %v2192 = vpack.c.b16 %v2108, %v2106
    %v2193 = vpack.c.b16 %v2111, %v2109
    %v2194 = vpack.c.b16 %v2112, %v2110
    %v2195 = vpack.c.b16 %v2115, %v2113
    %v2196 = vpack.c.b16 %v2116, %v2114
    %v2197 = vpack.c.b16 %v2119, %v2117
    %v2198 = vpack.c.b16 %v2120, %v2118
    %v2199 = vpack.c.b16 %v2123, %v2121
    %v2200 = vpack.c.b16 %v2124, %v2122
    %v2201 = vpack.c.b16 %v2127, %v2125
    %v2202 = vpack.c.b16 %v2128, %v2126
    %v2203 = vpack.c.b16 %v2131, %v2129
    %v2204 = vpack.c.b16 %v2132, %v2130
    %v2205 = vpack.c.b16 %v2135, %v2133
    %v2206 = vpack.c.b16 %v2136, %v2134
    %v2207 = vpack.c.b16 %v2139, %v2137
    %v2208 = vpack.c.b16 %v2140, %v2138
    %v2209 = vpack.c.b16 %v2143, %v2141
    %v2210 = vpack.c.b16 %v2144, %v2142
    %v2211 = vpack.c.b16 %v2147, %v2145
    %v2212 = vpack.c.b16 %v2148, %v2146
    %2277 = vmatpush.bf16.msra.mxu0 %v2163
    %2278 = vmatpush.bf16.msra.mxu0 %v2161
    %2279 = vmatpush.bf16.msra.mxu0 %v2159
    %2280 = vmatpush.bf16.msra.mxu0 %v2157
    %2281 = vmatpush.bf16.msra.mxu0 %v2155
    %2282 = vmatpush.bf16.msra.mxu0 %v2153
    %2283 = vmatpush.bf16.msra.mxu0 %v2151
    %2284 = vmatpush.bf16.msra.mxu0 %v2149
    %2285 = vmatmul.bf16.gmra.mxu0 %v1879
    %v2286 = vpop.f32.mrf.mxu0
    %v2287 = vadd.f32 %v1953, %v2286
    %v2288 = vpop.f32.mrf.mxu0
    %v2289 = vadd.f32 %v1953, %v2288
    %2290 = vmatmul.bf16.gmra.mxu0 %v1883
    %v2291 = vpop.f32.mrf.mxu0
    %v2292 = vadd.f32 %v1953, %v2291
    %v2293 = vpop.f32.mrf.mxu0
    %v2294 = vadd.f32 %v1953, %v2293
    %2295 = vdwg.mxu0
    %2296 = vmatpush.bf16.msra.mxu0 %v2179
    %2297 = vmatpush.bf16.msra.mxu0 %v2177
    %2298 = vmatpush.bf16.msra.mxu0 %v2175
    %2299 = vmatpush.bf16.msra.mxu0 %v2173
    %2300 = vmatpush.bf16.msra.mxu0 %v2171
    %2301 = vmatpush.bf16.msra.mxu0 %v2169
    %2302 = vmatpush.bf16.msra.mxu0 %v2167
    %2303 = vmatpush.bf16.msra.mxu0 %v2165
    %2304 = vmatmul.bf16.gmra.mxu0 %v1880
    %v2305 = vpop.f32.mrf.mxu0
    %v2306 = vadd.f32 %v2287, %v2305
    %v2307 = vpop.f32.mrf.mxu0
    %v2308 = vadd.f32 %v2289, %v2307
    %2309 = vmatmul.bf16.gmra.mxu0 %v1884
    %v2310 = vpop.f32.mrf.mxu0
    %v2311 = vadd.f32 %v2292, %v2310
    %v2312 = vpop.f32.mrf.mxu0
    %v2313 = vadd.f32 %v2294, %v2312
    %2314 = vdwg.mxu0
    %2315 = vmatpush.bf16.msra.mxu0 %v2195
    %2316 = vmatpush.bf16.msra.mxu0 %v2193
    %2317 = vmatpush.bf16.msra.mxu0 %v2191
    %2318 = vmatpush.bf16.msra.mxu0 %v2189
    %2319 = vmatpush.bf16.msra.mxu0 %v2187
    %2320 = vmatpush.bf16.msra.mxu0 %v2185
    %2321 = vmatpush.bf16.msra.mxu0 %v2183
    %2322 = vmatpush.bf16.msra.mxu0 %v2181
    %2323 = vmatmul.bf16.gmra.mxu0 %v1881
    %v2324 = vpop.f32.mrf.mxu0
    %v2325 = vadd.f32 %v2306, %v2324
    %v2326 = vpop.f32.mrf.mxu0
    %v2327 = vadd.f32 %v2308, %v2326
    %2328 = vmatmul.bf16.gmra.mxu0 %v1885
    %v2329 = vpop.f32.mrf.mxu0
    %v2330 = vadd.f32 %v2311, %v2329
    %v2331 = vpop.f32.mrf.mxu0
    %v2332 = vadd.f32 %v2313, %v2331
    %2333 = vdwg.mxu0
    %2334 = vmatpush.bf16.msra.mxu0 %v2211
    %2335 = vmatpush.bf16.msra.mxu0 %v2209
    %2336 = vmatpush.bf16.msra.mxu0 %v2207
    %2337 = vmatpush.bf16.msra.mxu0 %v2205
    %2338 = vmatpush.bf16.msra.mxu0 %v2203
    %2339 = vmatpush.bf16.msra.mxu0 %v2201
    %2340 = vmatpush.bf16.msra.mxu0 %v2199
    %2341 = vmatpush.bf16.msra.mxu0 %v2197
    %2342 = vmatmul.bf16.gmra.mxu0 %v1882
    %v2343 = vpop.f32.mrf.mxu0
    %v2344 = vadd.f32 %v2325, %v2343
    %v2345 = vpop.f32.mrf.mxu0
    %v2346 = vadd.f32 %v2327, %v2345
    %2347 = vmatmul.bf16.gmra.mxu0 %v1886
    %v2348 = vpop.f32.mrf.mxu0
    %v2349 = vadd.f32 %v2330, %v2348
    %v2350 = vpop.f32.mrf.mxu0
    %v2351 = vadd.f32 %v2332, %v2350
    %2352 = vdwg.mxu0
    %2353 = vmatpush.bf16.msra.mxu0 %v2164
    %2354 = vmatpush.bf16.msra.mxu0 %v2162
    %2355 = vmatpush.bf16.msra.mxu0 %v2160
    %2356 = vmatpush.bf16.msra.mxu0 %v2158
    %2357 = vmatpush.bf16.msra.mxu0 %v2156
    %2358 = vmatpush.bf16.msra.mxu0 %v2154
    %2359 = vmatpush.bf16.msra.mxu0 %v2152
    %2360 = vmatpush.bf16.msra.mxu0 %v2150
    %2361 = vmatmul.bf16.gmra.mxu0 %v1879
    %v2362 = vpop.f32.mrf.mxu0
    %v2363 = vadd.f32 %v1954, %v2362
    %v2364 = vpop.f32.mrf.mxu0
    %v2365 = vadd.f32 %v1954, %v2364
    %2366 = vmatmul.bf16.gmra.mxu0 %v1883
    %v2367 = vpop.f32.mrf.mxu0
    %v2368 = vadd.f32 %v1954, %v2367
    %v2369 = vpop.f32.mrf.mxu0
    %v2370 = vadd.f32 %v1954, %v2369
    %2371 = vdwg.mxu0
    %2372 = vmatpush.bf16.msra.mxu0 %v2180
    %2373 = vmatpush.bf16.msra.mxu0 %v2178
    %2374 = vmatpush.bf16.msra.mxu0 %v2176
    %2375 = vmatpush.bf16.msra.mxu0 %v2174
    %2376 = vmatpush.bf16.msra.mxu0 %v2172
    %2377 = vmatpush.bf16.msra.mxu0 %v2170
    %2378 = vmatpush.bf16.msra.mxu0 %v2168
    %2379 = vmatpush.bf16.msra.mxu0 %v2166
    %2380 = vmatmul.bf16.gmra.mxu0 %v1880
    %v2381 = vpop.f32.mrf.mxu0
    %v2382 = vadd.f32 %v2363, %v2381
    %v2383 = vpop.f32.mrf.mxu0
    %v2384 = vadd.f32 %v2365, %v2383
    %2385 = vmatmul.bf16.gmra.mxu0 %v1884
    %v2386 = vpop.f32.mrf.mxu0
    %v2387 = vadd.f32 %v2368, %v2386
    %v2388 = vpop.f32.mrf.mxu0
    %v2389 = vadd.f32 %v2370, %v2388
    %2390 = vdwg.mxu0
    %2391 = vmatpush.bf16.msra.mxu0 %v2196
    %2392 = vmatpush.bf16.msra.mxu0 %v2194
    %2393 = vmatpush.bf16.msra.mxu0 %v2192
    %2394 = vmatpush.bf16.msra.mxu0 %v2190
    %2395 = vmatpush.bf16.msra.mxu0 %v2188
    %2396 = vmatpush.bf16.msra.mxu0 %v2186
    %2397 = vmatpush.bf16.msra.mxu0 %v2184
    %2398 = vmatpush.bf16.msra.mxu0 %v2182
    %2399 = vmatmul.bf16.gmra.mxu0 %v1881
    %v2400 = vpop.f32.mrf.mxu0
    %v2401 = vadd.f32 %v2382, %v2400
    %v2402 = vpop.f32.mrf.mxu0
    %v2403 = vadd.f32 %v2384, %v2402
    %2404 = vmatmul.bf16.gmra.mxu0 %v1885
    %v2405 = vpop.f32.mrf.mxu0
    %v2406 = vadd.f32 %v2387, %v2405
    %v2407 = vpop.f32.mrf.mxu0
    %v2408 = vadd.f32 %v2389, %v2407
    %2409 = vdwg.mxu0
    %2410 = vmatpush.bf16.msra.mxu0 %v2212
    %2411 = vmatpush.bf16.msra.mxu0 %v2210
    %2412 = vmatpush.bf16.msra.mxu0 %v2208
    %2413 = vmatpush.bf16.msra.mxu0 %v2206
    %2414 = vmatpush.bf16.msra.mxu0 %v2204
    %2415 = vmatpush.bf16.msra.mxu0 %v2202
    %2416 = vmatpush.bf16.msra.mxu0 %v2200
    %2417 = vmatpush.bf16.msra.mxu0 %v2198
    %2418 = vmatmul.bf16.gmra.mxu0 %v1882
    %v2419 = vpop.f32.mrf.mxu0
    %v2420 = vadd.f32 %v2401, %v2419
    %v2421 = vpop.f32.mrf.mxu0
    %v2422 = vadd.f32 %v2403, %v2421
    %2423 = vmatmul.bf16.gmra.mxu0 %v1886
    %v2424 = vpop.f32.mrf.mxu0
    %v2425 = vadd.f32 %v2406, %v2424
    %v2426 = vpop.f32.mrf.mxu0
    %v2427 = vadd.f32 %v2408, %v2426
    %2428 = vdwg.mxu0
    %v2429 = vmax.f32 %v2344, 0.0
    %v2430 = vmax.f32 %v2420, 0.0
    %v2431 = vmax.f32 %v2346, 0.0
    %v2432 = vmax.f32 %v2422, 0.0
    %v2433 = vmax.f32 %v2349, 0.0
    %v2434 = vmax.f32 %v2425, 0.0
    %v2435 = vmax.f32 %v2351, 0.0
    %v2436 = vmax.f32 %v2427, 0.0
    %v2437 = vpack.c.bf16 %v2431, %v2429
    %v2438 = vpack.c.bf16 %v2432, %v2430
    %v2439 = vpack.c.bf16 %v2435, %v2433
    %v2440 = vpack.c.bf16 %v2436, %v2434
    %v2441 = vld [vmem:[#allocation7] sm:$0xf]
    %v2442 = vld [vmem:[#allocation7 + $0x4] sm:$0xf]
    %v2443 = vld [vmem:[#allocation7 + $0x8] sm:$0xf]
    %v2444 = vld [vmem:[#allocation7 + $0xc] sm:$0xf]
    %v2445 = vld [vmem:[#allocation7 + $0x10] sm:$0xf]
    %v2446 = vld [vmem:[#allocation7 + $0x14] sm:$0xf]
    %v2447 = vld [vmem:[#allocation7 + $0x18] sm:$0xf]
    %v2448 = vld [vmem:[#allocation7 + $0x1c] sm:$0xf]
    %v2449 = vld [vmem:[#allocation7 + $0x20] sm:$0xf]
    %v2450 = vld [vmem:[#allocation7 + $0x24] sm:$0xf]
    %v2451 = vld [vmem:[#allocation7 + $0x28] sm:$0xf]
    %v2452 = vld [vmem:[#allocation7 + $0x2c] sm:$0xf]
    %v2453 = vld [vmem:[#allocation7 + $0x30] sm:$0xf]
    %v2454 = vld [vmem:[#allocation7 + $0x34] sm:$0xf]
    %v2455 = vld [vmem:[#allocation7 + $0x38] sm:$0xf]
    %v2456 = vld [vmem:[#allocation7 + $0x3c] sm:$0xf]
    %v2457 = vld [vmem:[#allocation7 + $0x40] sm:$0xf]
    %v2458 = vld [vmem:[#allocation7 + $0x44] sm:$0xf]
    %v2459 = vld [vmem:[#allocation7 + $0x48] sm:$0xf]
    %v2460 = vld [vmem:[#allocation7 + $0x4c] sm:$0xf]
    %v2461 = vld [vmem:[#allocation7 + $0x50] sm:$0xf]
    %v2462 = vld [vmem:[#allocation7 + $0x54] sm:$0xf]
    %v2463 = vld [vmem:[#allocation7 + $0x58] sm:$0xf]
    %v2464 = vld [vmem:[#allocation7 + $0x5c] sm:$0xf]
    %v2465 = vld [vmem:[#allocation7 + $0x60] sm:$0xf]
    %v2466 = vld [vmem:[#allocation7 + $0x64] sm:$0xf]
    %v2467 = vld [vmem:[#allocation7 + $0x68] sm:$0xf]
    %v2468 = vld [vmem:[#allocation7 + $0x6c] sm:$0xf]
    %v2469 = vld [vmem:[#allocation7 + $0x70] sm:$0xf]
    %v2470 = vld [vmem:[#allocation7 + $0x74] sm:$0xf]
    %v2471 = vld [vmem:[#allocation7 + $0x78] sm:$0xf]
    %v2472 = vld [vmem:[#allocation7 + $0x7c] sm:$0xf]
    %v2473 = vld [vmem:[%s6] sm:$0x1]
    %v2475 = vperm.slane %v2473, 0
    %v2509 = vunpack.c.l.b16 %v2441
    %v2510 = vunpack.c.l.b16 %v2442
    %v2511 = vunpack.c.l.b16 %v2443
    %v2512 = vunpack.c.l.b16 %v2444
    %v2513 = vunpack.c.l.b16 %v2445
    %v2514 = vunpack.c.l.b16 %v2446
    %v2515 = vunpack.c.l.b16 %v2447
    %v2516 = vunpack.c.l.b16 %v2448
    %v2517 = vunpack.c.l.b16 %v2449
    %v2518 = vunpack.c.l.b16 %v2450
    %v2519 = vunpack.c.l.b16 %v2451
    %v2520 = vunpack.c.l.b16 %v2452
    %v2521 = vunpack.c.l.b16 %v2453
    %v2522 = vunpack.c.l.b16 %v2454
    %v2523 = vunpack.c.l.b16 %v2455
    %v2524 = vunpack.c.l.b16 %v2456
    %v2525 = vunpack.c.l.b16 %v2457
    %v2526 = vunpack.c.l.b16 %v2458
    %v2527 = vunpack.c.l.b16 %v2459
    %v2528 = vunpack.c.l.b16 %v2460
    %v2529 = vunpack.c.l.b16 %v2461
    %v2530 = vunpack.c.l.b16 %v2462
    %v2531 = vunpack.c.l.b16 %v2463
    %v2532 = vunpack.c.l.b16 %v2464
    %v2533 = vunpack.c.l.b16 %v2465
    %v2534 = vunpack.c.l.b16 %v2466
    %v2535 = vunpack.c.l.b16 %v2467
    %v2536 = vunpack.c.l.b16 %v2468
    %v2537 = vunpack.c.l.b16 %v2469
    %v2538 = vunpack.c.l.b16 %v2470
    %v2539 = vunpack.c.l.b16 %v2471
    %v2540 = vunpack.c.l.b16 %v2472
    %v2541 = vpack.c.b16 %v2510, %v2509
    %v2542 = vpack.c.b16 %v2512, %v2511
    %v2543 = vpack.c.b16 %v2514, %v2513
    %v2544 = vpack.c.b16 %v2516, %v2515
    %v2545 = vpack.c.b16 %v2518, %v2517
    %v2546 = vpack.c.b16 %v2520, %v2519
    %v2547 = vpack.c.b16 %v2522, %v2521
    %v2548 = vpack.c.b16 %v2524, %v2523
    %v2549 = vpack.c.b16 %v2526, %v2525
    %v2550 = vpack.c.b16 %v2528, %v2527
    %v2551 = vpack.c.b16 %v2530, %v2529
    %v2552 = vpack.c.b16 %v2532, %v2531
    %v2553 = vpack.c.b16 %v2534, %v2533
    %v2554 = vpack.c.b16 %v2536, %v2535
    %v2555 = vpack.c.b16 %v2538, %v2537
    %v2556 = vpack.c.b16 %v2540, %v2539
    %2573 = vmatpush.bf16.msra.mxu0 %v2548
    %2574 = vmatpush.bf16.msra.mxu0 %v2547
    %2575 = vmatpush.bf16.msra.mxu0 %v2546
    %2576 = vmatpush.bf16.msra.mxu0 %v2545
    %2577 = vmatpush.bf16.msra.mxu0 %v2544
    %2578 = vmatpush.bf16.msra.mxu0 %v2543
    %2579 = vmatpush.bf16.msra.mxu0 %v2542
    %2580 = vmatpush.bf16.msra.mxu0 %v2541
    %2581 = vmatmul.bf16.gmra.mxu0 %v2437
    %v2582 = vpop.f32.mrf.mxu0
    %v2583 = vadd.f32 %v2475, %v2582
    %v2584 = vpop.f32.mrf.mxu0
    %v2585 = vadd.f32 %v2475, %v2584
    %2586 = vmatmul.bf16.gmra.mxu0 %v2439
    %v2587 = vpop.f32.mrf.mxu0
    %v2588 = vadd.f32 %v2475, %v2587
    %v2589 = vpop.f32.mrf.mxu0
    %v2590 = vadd.f32 %v2475, %v2589
    %2591 = vdwg.mxu0
    %2592 = vmatpush.bf16.msra.mxu0 %v2556
    %2593 = vmatpush.bf16.msra.mxu0 %v2555
    %2594 = vmatpush.bf16.msra.mxu0 %v2554
    %2595 = vmatpush.bf16.msra.mxu0 %v2553
    %2596 = vmatpush.bf16.msra.mxu0 %v2552
    %2597 = vmatpush.bf16.msra.mxu0 %v2551
    %2598 = vmatpush.bf16.msra.mxu0 %v2550
    %2599 = vmatpush.bf16.msra.mxu0 %v2549
    %2600 = vmatmul.bf16.gmra.mxu0 %v2438
    %v2601 = vpop.f32.mrf.mxu0
    %v2602 = vadd.f32 %v2583, %v2601
    %v2603 = vpop.f32.mrf.mxu0
    %v2604 = vadd.f32 %v2585, %v2603
    %2605 = vmatmul.bf16.gmra.mxu0 %v2440
    %v2606 = vpop.f32.mrf.mxu0
    %v2607 = vadd.f32 %v2588, %v2606
    %v2608 = vpop.f32.mrf.mxu0
    %v2609 = vadd.f32 %v2590, %v2608
    %2610 = vdwg.mxu0
    %v2611 = vmax.f32 %v2602, 0.0
    %v2612 = vmax.f32 %v2604, 0.0
    %v2613 = vmax.f32 %v2607, 0.0
    %v2614 = vmax.f32 %v2609, 0.0
    %v2615 = vpack.c.bf16 %v2612, %v2611
    %v2616 = vpack.c.bf16 %v2614, %v2613
    %v2617 = vld [vmem:[%s7] sm:$0xf]
    %v2618 = vld [vmem:[%s7 + $0x4] sm:$0xf]
    %v2619 = vld [vmem:[%s7 + $0x8] sm:$0xf]
    %v2620 = vld [vmem:[%s7 + $0xc] sm:$0xf]
    %v2621 = vld [vmem:[%s7 + $0x10] sm:$0xf]
    %v2622 = vld [vmem:[%s7 + $0x14] sm:$0xf]
    %v2623 = vld [vmem:[%s7 + $0x18] sm:$0xf]
    %v2624 = vld [vmem:[%s7 + $0x1c] sm:$0xf]
    %v2625 = vld [vmem:[%s7 + $0x20] sm:$0xf]
    %v2626 = vld [vmem:[%s7 + $0x24] sm:$0xf]
    %v2627 = vld [vmem:[%s7 + $0x28] sm:$0xf]
    %v2628 = vld [vmem:[%s7 + $0x2c] sm:$0xf]
    %v2629 = vld [vmem:[%s7 + $0x30] sm:$0xf]
    %v2630 = vld [vmem:[%s7 + $0x34] sm:$0xf]
    %v2631 = vld [vmem:[%s7 + $0x38] sm:$0xf]
    %v2632 = vld [vmem:[%s7 + $0x3c] sm:$0xf]
    %v2633 = vld [vmem:[%s8] sm:$0x1]
    %v2635 = vperm.slane %v2633, 0
    %v2653 = vunpack.c.l.b16 %v2617
    %v2654 = vunpack.c.l.b16 %v2618
    %v2655 = vunpack.c.l.b16 %v2619
    %v2656 = vunpack.c.l.b16 %v2620
    %v2657 = vunpack.c.l.b16 %v2621
    %v2658 = vunpack.c.l.b16 %v2622
    %v2659 = vunpack.c.l.b16 %v2623
    %v2660 = vunpack.c.l.b16 %v2624
    %v2661 = vunpack.c.l.b16 %v2625
    %v2662 = vunpack.c.l.b16 %v2626
    %v2663 = vunpack.c.l.b16 %v2627
    %v2664 = vunpack.c.l.b16 %v2628
    %v2665 = vunpack.c.l.b16 %v2629
    %v2666 = vunpack.c.l.b16 %v2630
    %v2667 = vunpack.c.l.b16 %v2631
    %v2668 = vunpack.c.l.b16 %v2632
    %v2669 = vpack.c.b16 %v2654, %v2653
    %v2670 = vpack.c.b16 %v2656, %v2655
    %v2671 = vpack.c.b16 %v2658, %v2657
    %v2672 = vpack.c.b16 %v2660, %v2659
    %v2673 = vpack.c.b16 %v2662, %v2661
    %v2674 = vpack.c.b16 %v2664, %v2663
    %v2675 = vpack.c.b16 %v2666, %v2665
    %v2676 = vpack.c.b16 %v2668, %v2667
    %2685 = vmatpush.bf16.msra.mxu0 %v2676
    %2686 = vmatpush.bf16.msra.mxu0 %v2675
    %2687 = vmatpush.bf16.msra.mxu0 %v2674
    %2688 = vmatpush.bf16.msra.mxu0 %v2673
    %2689 = vmatpush.bf16.msra.mxu0 %v2672
    %2690 = vmatpush.bf16.msra.mxu0 %v2671
    %2691 = vmatpush.bf16.msra.mxu0 %v2670
    %2692 = vmatpush.bf16.msra.mxu0 %v2669
    %2693 = vmatmul.bf16.gmra.mxu0 %v2615
    %v2694 = vpop.f32.mrf.mxu0
    %v2695 = vadd.f32 %v2635, %v2694
    %v2696 = vpop.f32.mrf.mxu0
    %v2697 = vadd.f32 %v2635, %v2696
    %2698 = vmatmul.bf16.gmra.mxu0 %v2616
    %v2699 = vpop.f32.mrf.mxu0
    %v2700 = vadd.f32 %v2635, %v2699
    %v2701 = vpop.f32.mrf.mxu0
    %v2702 = vadd.f32 %v2635, %v2701
    %2703 = vdwg.mxu0
    %vm2704 = vcmask 80896
    %2705 = vst.msk [vmem:[%s9] sm:$0xff] %vm2704, %v2695
    %2706 = vst.msk [vmem:[%s9 + $0x8] sm:$0xff] %vm2704, %v2697
    %2707 = vst.msk [vmem:[%s9 + $0x10] sm:$0xff] %vm2704, %v2700
    %2708 = vst.msk [vmem:[%s9 + $0x18] sm:$0xff] %vm2704, %v2702
    // Predicated region
    $region54: #{net_forward.1} parent=1 // pred_check
      _
    $region55: #{net_forward.1} parent=1 // pred_check_branch
      %2710 = sbr.rel (0) target = $region57
    $region56: #{net_forward.1} parent=1 // pred_region
      _
    $region57: #{net_forward.1} parent=1 // pred_fallthru
      _
    // Predicated region
    $region58: #{net_forward.1} parent=1 // pred_check
      _
    $region59: #{net_forward.1} parent=1 // pred_check_branch
      %2712 = sbr.rel (0) target = $region61
    $region60: #{net_forward.1} parent=1 // pred_region
      _
    $region61: #{net_forward.1} parent=1 // pred_fallthru
      _
    %2713 = vsyncpa [#allocation3], 1
    %2714 = vsyncpa [#allocation5], 1
    %2715 = vsyncpa [#allocation8], 1

</llo_original>
